<compile_context>
chip_gen: v6e
topology: v6e:2x2x1
jax: 0.10.0
libtpu: 0.0.40
codegen_flags: <defaults>
</compile_context>

<pallas_src>
import jax
import jax.numpy as jnp
from jax.experimental import pallas as pl
from jax.experimental.pallas import tpu as pltpu


def _round_up(x, m):
    return (x + m - 1) // m * m


def _cdiv(a, b):
    return (a + b - 1) // b


def _make_kernel(n_layers, real_dims, apply_logsoftmax, eps=1e-5):
    """real_dims[i] = true (unpadded) output feature count of layer i."""

    def kernel(x_ref, *refs):
        out_ref = refs[-1]
        p = refs[:-1]
        h = x_ref[...]  # bf16 (TM, K_pad); padded rows/lanes are zero.
        for li in range(n_layers):
            w1_ref = p[3 * li]
            w2_ref = p[3 * li + 1]
            vec_ref = p[3 * li + 2]          # (4, d_pad) f32: b1, b2, gamma, beta
            n_real = real_dims[li]

            v = vec_ref[...]
            b1, b2, gamma, beta = v[0:1, :], v[1:2, :], v[2:3, :], v[3:4, :]

            # Linear 1 (MXU, bf16 in / f32 accumulate) + bias
            e1 = jnp.dot(h.astype(jnp.bfloat16), w1_ref[...],
                         preferred_element_type=jnp.float32) + b1

            # QuickGELU: x * sigmoid(1.702 x)  (exp -> EUP, reciprocal -> EUP vrcp)
            t = jnp.exp(-1.702 * e1)
            g = e1 * pl.reciprocal(1.0 + t, approx=True)

            # Linear 2 (MXU) + bias   (dropout == identity at inference)
            e2 = jnp.dot(g.astype(jnp.bfloat16), w2_ref[...],
                         preferred_element_type=jnp.float32) + b2

            # Residual + LayerNorm over the real lanes only.
            # Padded lanes of e1/e2 are exactly zero (zero-padded weights/biases),
            # so the plain sums over all lanes equal sums over the real lanes and
            # no lane mask is needed (E[x^2] - E[x]^2 formulation).
            s = e1 + e2
            inv_n = 1.0 / n_real
            mean = jnp.sum(s, axis=-1, keepdims=True) * inv_n
            ex2 = jnp.sum(s * s, axis=-1, keepdims=True) * inv_n
            var = ex2 - mean * mean
            # gamma/beta are zero-padded -> padded lanes of h stay exactly 0.
            h = (s - mean) * jax.lax.rsqrt(var + eps) * gamma + beta

        if apply_logsoftmax:
            n_real = real_dims[-1]
            n_pad = h.shape[-1]
            if n_real != n_pad:
                lane = jax.lax.broadcasted_iota(jnp.int32, h.shape, 1)
                h = jnp.where(lane < n_real, h, -1e30)  # exclude padded lanes
            m = jnp.max(h, axis=-1, keepdims=True)
            z = h - m
            lse = jnp.log(jnp.sum(jnp.exp(z), axis=-1, keepdims=True))
            h = z - lse

        out_ref[...] = h.astype(out_ref.dtype)

    return kernel


def mlp_forward(x, params, *, return_embeds=False, tm_cap=256, out_dtype=None):
    """x: (M, K) f32.  params: list of (w1,b1,w2,b2,gamma,beta) in real PyTorch
    shapes (w already transposed to (in, out); b/gamma/beta as (1, out))."""
    M, K = x.shape
    n_layers = len(params)
    out_dim = params[-1][2].shape[1]

    if out_dtype is None:
        # log-softmax consumers get f32; embeddings tolerate bf16 (halves writeback).
        out_dtype = jnp.bfloat16 if return_embeds else jnp.float32

    # ---- batch tiling: >=2 grid steps when M allows (v7x two TCs), minimal pad rows ----
    min_steps = 2 if M > 8 else 1
    n_steps = max(_cdiv(M, tm_cap), min_steps)
    tm = _round_up(_cdiv(M, n_steps), 8)
    m_pad = _round_up(M, tm)
    n_steps = m_pad // tm

    # ---- pad feature dims to multiples of 128 (lane-dense, proper MXU tiles) ----
    k_pad = _round_up(K, 128)
    x_p = jnp.zeros((m_pad, k_pad), jnp.bfloat16).at[:M, :K].set(x.astype(jnp.bfloat16))

    padded_params = []
    real_dims = []
    in_dim_pad = k_pad
    for (w1, b1, w2, b2, gamma, beta) in params:
        d = w1.shape[1]            # == w2.shape[1] in this model
        d_pad = _round_up(d, 128)
        w1_p = (jnp.zeros((in_dim_pad, d_pad), jnp.bfloat16)
                .at[:w1.shape[0], :d].set(w1.astype(jnp.bfloat16)))
        w2_p = (jnp.zeros((d_pad, d_pad), jnp.bfloat16)
                .at[:w2.shape[0], :d].set(w2.astype(jnp.bfloat16)))
        # pack b1/b2/gamma/beta into a single (4, d_pad) block -> 1 DMA per layer
        vec_p = (jnp.zeros((4, d_pad), jnp.float32)
                 .at[0, :d].set(b1.reshape(-1))
                 .at[1, :d].set(b2.reshape(-1))
                 .at[2, :d].set(gamma.reshape(-1))
                 .at[3, :d].set(beta.reshape(-1)))
        padded_params.append((w1_p, w2_p, vec_p))
        real_dims.append(d)
        in_dim_pad = d_pad
    n_out_pad = in_dim_pad

    apply_logsoftmax = not return_embeds
    kernel = _make_kernel(n_layers, tuple(real_dims), apply_logsoftmax)

    # ---- generation-aware VMEM budget ----
    try:
        phys_vmem = int(pltpu.get_tpu_info().vmem_capacity_bytes)
    except Exception:
        phys_vmem = 64 * 2**20          # safe default (v7x per-TC size)
    vmem_budget = int(phys_vmem * 0.85)

    param_bytes = sum(int(a.size) * a.dtype.itemsize
                      for layer in padded_params for a in layer)
    max_d = max([k_pad] + [_round_up(d, 128) for d in real_dims])
    out_itemsize = jnp.dtype(out_dtype).itemsize
    io_bytes = 2 * (tm * k_pad * 2 + tm * n_out_pad * out_itemsize)   # double-buffered tiles
    work_bytes = 8 * tm * max_d * 4                                   # f32 temps per step

    if param_bytes + io_bytes + work_bytes > vmem_budget:
        # TODO(synk): add K/N weight tiling fallback for widths exceeding VMEM residency.
        raise NotImplementedError(
            "Padded weights do not fit VMEM-resident on this TPU generation; "
            "K/N weight tiling is not implemented.")

    # ---- advisory cost estimate ----
    flops = 0
    transcendentals = 0
    din = k_pad
    for d in real_dims:
        d_p = _round_up(d, 128)
        flops += 2 * m_pad * (din * d_p + d_p * d_p)
        transcendentals += m_pad * d_p
        din = d_p
    if apply_logsoftmax:
        transcendentals += m_pad * n_out_pad
    bytes_accessed = int(x_p.size) * 2 + param_bytes + m_pad * n_out_pad * out_itemsize

    in_arrays = [x_p] + [a for layer in padded_params for a in layer]

    def build_call(single_buffer_params):
        # x / out tiled over M (pipelined, default double-buffer); params resident.
        in_specs = [pl.BlockSpec((tm, k_pad), lambda i: (i, 0))]
        for layer in padded_params:
            for arr in layer:
                if single_buffer_params:
                    spec = pl.BlockSpec(arr.shape, lambda i: (0, 0),
                                        pipeline_mode=pl.Buffered(1))
                else:
                    spec = pl.BlockSpec(arr.shape, lambda i: (0, 0))
                in_specs.append(spec)
        out_specs = pl.BlockSpec((tm, n_out_pad), lambda i: (i, 0))

        resident = param_bytes * (1 if single_buffer_params else 2)
        vmem_limit = int(min(max(resident + io_bytes + work_bytes + (8 << 20),
                                 32 << 20),
                             vmem_budget))
        return pl.pallas_call(
            kernel,
            out_shape=jax.ShapeDtypeStruct((m_pad, n_out_pad), out_dtype),
            grid=(n_steps,),
            in_specs=in_specs,
            out_specs=out_specs,
            compiler_params=pltpu.CompilerParams(
                dimension_semantics=("parallel",),
                vmem_limit_bytes=vmem_limit),
            cost_estimate=pl.CostEstimate(
                flops=int(flops),
                transcendentals=int(transcendentals),
                bytes_accessed=int(bytes_accessed)),
        )

    try:
        out_p = build_call(True)(*in_arrays)
    except Exception:
        # Fallback for JAX versions that reject pipeline_mode=pl.Buffered(1):
        # identical kernel, default (double-buffered) resident params.
        out_p = build_call(False)(*in_arrays)

    return out_p[:M, :out_dim]


# ----------------------------- init & reference -----------------------------

def init_linear(key, in_dim, out_dim):
    """PyTorch-style default init; returns W already transposed to (in, out)."""
    kw, kb = jax.random.split(key)
    bound = 1.0 / (in_dim ** 0.5)
    w = jax.random.uniform(kw, (in_dim, out_dim), jnp.float32, -bound, bound)
    b = jax.random.uniform(kb, (1, out_dim), jnp.float32, -bound, bound)
    return w, b


def init_mlp_params(key, input_dim, hidden_dim, output_dim, num_layers):
    """Builds params matching MLP.__init__ structure (per layer: lin, lin2, ln)."""
    params = []
    if num_layers > 1:
        dims = [(input_dim, hidden_dim)]
        for _ in range(num_layers - 2):
            dims.append((hidden_dim, hidden_dim))
        dims.append((hidden_dim, output_dim))
    else:
        dims = [(input_dim, output_dim)]
    for (din, d) in dims:
        key, k1, k2 = jax.random.split(key, 3)
        w1, b1 = init_linear(k1, din, d)
        w2, b2 = init_linear(k2, d, d)
        gamma = jnp.ones((1, d), jnp.float32)
        beta = jnp.zeros((1, d), jnp.float32)
        params.append((w1, b1, w2, b2, gamma, beta))
    return params


def mlp_reference(x, params, return_embeds=False, eps=1e-5):
    """Pure-JAX f32 reference matching the PyTorch forward (dropout = identity)."""
    h = x
    for (w1, b1, w2, b2, gamma, beta) in params:
        e1 = h @ w1 + b1
        g = e1 * jax.nn.sigmoid(1.702 * e1)
        e2 = g @ w2 + b2
        s = e1 + e2
        mean = jnp.mean(s, axis=-1, keepdims=True)
        var = jnp.mean((s - mean) ** 2, axis=-1, keepdims=True)
        h = (s - mean) / jnp.sqrt(var + eps) * gamma + beta
    if return_embeds:
        return h
    return jax.nn.log_softmax(h, axis=-1)


if __name__ == "__main__":
    key = jax.random.PRNGKey(0)
    kx, kp = jax.random.split(key)

    batch, input_dim, hidden_dim, output_dim, num_layers = 8, 32, 32, 16, 3
    # dropout = 0.0 (inference semantics)

    x = jax.random.normal(kx, (batch, input_dim), jnp.float32)
    params = init_mlp_params(kp, input_dim, hidden_dim, output_dim, num_layers)

    # log-softmax path
    out = mlp_forward(x, params, return_embeds=False)
    jax.block_until_ready(out)
    assert out.shape == (batch, output_dim)

    # rows sum (in prob space) to ~1
    row_sums = jnp.sum(jnp.exp(out), axis=-1)
    assert bool(jnp.all(jnp.abs(row_sums - 1.0) < 1e-3))

    # bf16-operand tolerance check against the f32 reference
    ref = mlp_reference(x, params, return_embeds=False)
    assert bool(jnp.max(jnp.abs(out - ref)) < 0.1)

    # embeds path (bf16 output)
    emb = mlp_forward(x, params, return_embeds=True)
    jax.block_until_ready(emb)
    assert emb.shape == (batch, output_dim)
    emb_ref = mlp_reference(x, params, return_embeds=True)
    assert bool(jnp.max(jnp.abs(emb.astype(jnp.float32) - emb_ref)) < 0.1)

    print("KERNEL_OK")
</pallas_src>

<mosaic_0001>
module attributes {stable_mosaic.version = 11 : i64} {
  func.func @kernel(%arg0: i32, %arg1: memref<8x128xbf16, #tpu.memory_space<vmem>>, %arg2: memref<128x128xbf16, #tpu.memory_space<vmem>>, %arg3: memref<128x128xbf16, #tpu.memory_space<vmem>>, %arg4: memref<4x128xf32, #tpu.memory_space<vmem>>, %arg5: memref<128x128xbf16, #tpu.memory_space<vmem>>, %arg6: memref<128x128xbf16, #tpu.memory_space<vmem>>, %arg7: memref<4x128xf32, #tpu.memory_space<vmem>>, %arg8: memref<128x128xbf16, #tpu.memory_space<vmem>>, %arg9: memref<128x128xbf16, #tpu.memory_space<vmem>>, %arg10: memref<4x128xf32, #tpu.memory_space<vmem>>, %arg11: memref<8x128xf32, #tpu.memory_space<vmem>>) attributes {dimension_semantics = [#tpu.dimension_semantics<parallel>], iteration_bounds = array<i64: 1>, scalar_prefetch = 0 : i64, scratch_operands = 0 : i64, tpu.core_type = #tpu.core_type<tc>, window_params = [{transform_indices = @transform_0, window_bounds = array<i64: 8, 128>}, {pipeline_mode = #tpu.pipeline_mode<synchronous>, transform_indices = @transform_1, window_bounds = array<i64: 128, 128>}, {pipeline_mode = #tpu.pipeline_mode<synchronous>, transform_indices = @transform_2, window_bounds = array<i64: 128, 128>}, {pipeline_mode = #tpu.pipeline_mode<synchronous>, transform_indices = @transform_3, window_bounds = array<i64: 4, 128>}, {pipeline_mode = #tpu.pipeline_mode<synchronous>, transform_indices = @transform_4, window_bounds = array<i64: 128, 128>}, {pipeline_mode = #tpu.pipeline_mode<synchronous>, transform_indices = @transform_5, window_bounds = array<i64: 128, 128>}, {pipeline_mode = #tpu.pipeline_mode<synchronous>, transform_indices = @transform_6, window_bounds = array<i64: 4, 128>}, {pipeline_mode = #tpu.pipeline_mode<synchronous>, transform_indices = @transform_7, window_bounds = array<i64: 128, 128>}, {pipeline_mode = #tpu.pipeline_mode<synchronous>, transform_indices = @transform_8, window_bounds = array<i64: 128, 128>}, {pipeline_mode = #tpu.pipeline_mode<synchronous>, transform_indices = @transform_9, window_bounds = array<i64: 4, 128>}, {transform_indices = @transform_10, window_bounds = array<i64: 8, 128>}]} {
    %c0 = arith.constant 0 : index
    %c0_0 = arith.constant 0 : index
    %0 = vector.load %arg1[%c0, %c0_0] : memref<8x128xbf16, #tpu.memory_space<vmem>>, vector<8x128xbf16>
    %c0_1 = arith.constant 0 : index
    %c0_2 = arith.constant 0 : index
    %1 = vector.load %arg4[%c0_1, %c0_2] : memref<4x128xf32, #tpu.memory_space<vmem>>, vector<4x128xf32>
    %2 = vector.extract_strided_slice %1 {offsets = [0, 0], sizes = [1, 128], strides = [1, 1]} : vector<4x128xf32> to vector<1x128xf32>
    %3 = vector.extract_strided_slice %1 {offsets = [1, 0], sizes = [1, 128], strides = [1, 1]} : vector<4x128xf32> to vector<1x128xf32>
    %4 = vector.extract_strided_slice %1 {offsets = [2, 0], sizes = [1, 128], strides = [1, 1]} : vector<4x128xf32> to vector<1x128xf32>
    %5 = vector.extract_strided_slice %1 {offsets = [3, 0], sizes = [1, 128], strides = [1, 1]} : vector<4x128xf32> to vector<1x128xf32>
    %c0_3 = arith.constant 0 : index
    %c0_4 = arith.constant 0 : index
    %6 = vector.load %arg2[%c0_3, %c0_4] : memref<128x128xbf16, #tpu.memory_space<vmem>>, vector<128x128xbf16>
    %cst = arith.constant dense<0.000000e+00> : vector<8x128xf32>
    %7 = tpu.matmul %0, %6, %cst {dimension_numbers = #tpu.dot_dimension_numbers<[1], [0], [0], [1], [0, 0, 1, 1], [], []>} : vector<8x128xbf16>, vector<128x128xbf16>, vector<8x128xf32> -> vector<8x128xf32>
    %8 = vector.broadcast %2 : vector<1x128xf32> to vector<8x128xf32>
    %9 = arith.addf %7, %8 : vector<8x128xf32>
    %cst_5 = arith.constant -1.702000e+00 : f32
    %10 = vector.broadcast %cst_5 : f32 to vector<8x128xf32>
    %11 = arith.mulf %10, %9 : vector<8x128xf32>
    %12 = math.exp %11 : vector<8x128xf32>
    %cst_6 = arith.constant 1.000000e+00 : f32
    %13 = vector.broadcast %cst_6 : f32 to vector<8x128xf32>
    %14 = arith.addf %13, %12 : vector<8x128xf32>
    %15 = tpu.reciprocal %14 {approx = true} : vector<8x128xf32> -> vector<8x128xf32>
    %16 = arith.mulf %9, %15 : vector<8x128xf32>
    %17 = arith.truncf %16 : vector<8x128xf32> to vector<8x128xbf16>
    %c0_7 = arith.constant 0 : index
    %c0_8 = arith.constant 0 : index
    %18 = vector.load %arg3[%c0_7, %c0_8] : memref<128x128xbf16, #tpu.memory_space<vmem>>, vector<128x128xbf16>
    %cst_9 = arith.constant dense<0.000000e+00> : vector<8x128xf32>
    %19 = tpu.matmul %17, %18, %cst_9 {dimension_numbers = #tpu.dot_dimension_numbers<[1], [0], [0], [1], [0, 0, 1, 1], [], []>} : vector<8x128xbf16>, vector<128x128xbf16>, vector<8x128xf32> -> vector<8x128xf32>
    %20 = vector.broadcast %3 : vector<1x128xf32> to vector<8x128xf32>
    %21 = arith.addf %19, %20 : vector<8x128xf32>
    %22 = arith.addf %9, %21 : vector<8x128xf32>
    %cst_10 = arith.constant dense<0.000000e+00> : vector<8xf32>
    %23 = vector.multi_reduction <add>, %22, %cst_10 [1] : vector<8x128xf32> to vector<8xf32>
    %24 = vector.shape_cast %23 : vector<8xf32> to vector<8x1xf32>
    %cst_11 = arith.constant 3.125000e-02 : f32
    %25 = vector.broadcast %cst_11 : f32 to vector<8x1xf32>
    %26 = arith.mulf %24, %25 : vector<8x1xf32>
    %27 = arith.mulf %22, %22 : vector<8x128xf32>
    %cst_12 = arith.constant dense<0.000000e+00> : vector<8xf32>
    %28 = vector.multi_reduction <add>, %27, %cst_12 [1] : vector<8x128xf32> to vector<8xf32>
    %29 = vector.shape_cast %28 : vector<8xf32> to vector<8x1xf32>
    %cst_13 = arith.constant 3.125000e-02 : f32
    %30 = vector.broadcast %cst_13 : f32 to vector<8x1xf32>
    %31 = arith.mulf %29, %30 : vector<8x1xf32>
    %32 = arith.mulf %26, %26 : vector<8x1xf32>
    %33 = arith.subf %31, %32 : vector<8x1xf32>
    %34 = vector.broadcast %26 : vector<8x1xf32> to vector<8x128xf32>
    %35 = arith.subf %22, %34 : vector<8x128xf32>
    %cst_14 = arith.constant 9.99999974E-6 : f32
    %36 = vector.broadcast %cst_14 : f32 to vector<8x1xf32>
    %37 = arith.addf %33, %36 : vector<8x1xf32>
    %38 = math.rsqrt %37 : vector<8x1xf32>
    %39 = vector.broadcast %38 : vector<8x1xf32> to vector<8x128xf32>
    %40 = arith.mulf %35, %39 : vector<8x128xf32>
    %41 = vector.broadcast %4 : vector<1x128xf32> to vector<8x128xf32>
    %42 = arith.mulf %40, %41 : vector<8x128xf32>
    %43 = vector.broadcast %5 : vector<1x128xf32> to vector<8x128xf32>
    %44 = arith.addf %42, %43 : vector<8x128xf32>
    %c0_15 = arith.constant 0 : index
    %c0_16 = arith.constant 0 : index
    %45 = vector.load %arg7[%c0_15, %c0_16] : memref<4x128xf32, #tpu.memory_space<vmem>>, vector<4x128xf32>
    %46 = vector.extract_strided_slice %45 {offsets = [0, 0], sizes = [1, 128], strides = [1, 1]} : vector<4x128xf32> to vector<1x128xf32>
    %47 = vector.extract_strided_slice %45 {offsets = [1, 0], sizes = [1, 128], strides = [1, 1]} : vector<4x128xf32> to vector<1x128xf32>
    %48 = vector.extract_strided_slice %45 {offsets = [2, 0], sizes = [1, 128], strides = [1, 1]} : vector<4x128xf32> to vector<1x128xf32>
    %49 = vector.extract_strided_slice %45 {offsets = [3, 0], sizes = [1, 128], strides = [1, 1]} : vector<4x128xf32> to vector<1x128xf32>
    %50 = arith.truncf %44 : vector<8x128xf32> to vector<8x128xbf16>
    %c0_17 = arith.constant 0 : index
    %c0_18 = arith.constant 0 : index
    %51 = vector.load %arg5[%c0_17, %c0_18] : memref<128x128xbf16, #tpu.memory_space<vmem>>, vector<128x128xbf16>
    %cst_19 = arith.constant dense<0.000000e+00> : vector<8x128xf32>
    %52 = tpu.matmul %50, %51, %cst_19 {dimension_numbers = #tpu.dot_dimension_numbers<[1], [0], [0], [1], [0, 0, 1, 1], [], []>} : vector<8x128xbf16>, vector<128x128xbf16>, vector<8x128xf32> -> vector<8x128xf32>
    %53 = vector.broadcast %46 : vector<1x128xf32> to vector<8x128xf32>
    %54 = arith.addf %52, %53 : vector<8x128xf32>
    %cst_20 = arith.constant -1.702000e+00 : f32
    %55 = vector.broadcast %cst_20 : f32 to vector<8x128xf32>
    %56 = arith.mulf %55, %54 : vector<8x128xf32>
    %57 = math.exp %56 : vector<8x128xf32>
    %cst_21 = arith.constant 1.000000e+00 : f32
    %58 = vector.broadcast %cst_21 : f32 to vector<8x128xf32>
    %59 = arith.addf %58, %57 : vector<8x128xf32>
    %60 = tpu.reciprocal %59 {approx = true} : vector<8x128xf32> -> vector<8x128xf32>
    %61 = arith.mulf %54, %60 : vector<8x128xf32>
    %62 = arith.truncf %61 : vector<8x128xf32> to vector<8x128xbf16>
    %c0_22 = arith.constant 0 : index
    %c0_23 = arith.constant 0 : index
    %63 = vector.load %arg6[%c0_22, %c0_23] : memref<128x128xbf16, #tpu.memory_space<vmem>>, vector<128x128xbf16>
    %cst_24 = arith.constant dense<0.000000e+00> : vector<8x128xf32>
    %64 = tpu.matmul %62, %63, %cst_24 {dimension_numbers = #tpu.dot_dimension_numbers<[1], [0], [0], [1], [0, 0, 1, 1], [], []>} : vector<8x128xbf16>, vector<128x128xbf16>, vector<8x128xf32> -> vector<8x128xf32>
    %65 = vector.broadcast %47 : vector<1x128xf32> to vector<8x128xf32>
    %66 = arith.addf %64, %65 : vector<8x128xf32>
    %67 = arith.addf %54, %66 : vector<8x128xf32>
    %cst_25 = arith.constant dense<0.000000e+00> : vector<8xf32>
    %68 = vector.multi_reduction <add>, %67, %cst_25 [1] : vector<8x128xf32> to vector<8xf32>
    %69 = vector.shape_cast %68 : vector<8xf32> to vector<8x1xf32>
    %cst_26 = arith.constant 3.125000e-02 : f32
    %70 = vector.broadcast %cst_26 : f32 to vector<8x1xf32>
    %71 = arith.mulf %69, %70 : vector<8x1xf32>
    %72 = arith.mulf %67, %67 : vector<8x128xf32>
    %cst_27 = arith.constant dense<0.000000e+00> : vector<8xf32>
    %73 = vector.multi_reduction <add>, %72, %cst_27 [1] : vector<8x128xf32> to vector<8xf32>
    %74 = vector.shape_cast %73 : vector<8xf32> to vector<8x1xf32>
    %cst_28 = arith.constant 3.125000e-02 : f32
    %75 = vector.broadcast %cst_28 : f32 to vector<8x1xf32>
    %76 = arith.mulf %74, %75 : vector<8x1xf32>
    %77 = arith.mulf %71, %71 : vector<8x1xf32>
    %78 = arith.subf %76, %77 : vector<8x1xf32>
    %79 = vector.broadcast %71 : vector<8x1xf32> to vector<8x128xf32>
    %80 = arith.subf %67, %79 : vector<8x128xf32>
    %cst_29 = arith.constant 9.99999974E-6 : f32
    %81 = vector.broadcast %cst_29 : f32 to vector<8x1xf32>
    %82 = arith.addf %78, %81 : vector<8x1xf32>
    %83 = math.rsqrt %82 : vector<8x1xf32>
    %84 = vector.broadcast %83 : vector<8x1xf32> to vector<8x128xf32>
    %85 = arith.mulf %80, %84 : vector<8x128xf32>
    %86 = vector.broadcast %48 : vector<1x128xf32> to vector<8x128xf32>
    %87 = arith.mulf %85, %86 : vector<8x128xf32>
    %88 = vector.broadcast %49 : vector<1x128xf32> to vector<8x128xf32>
    %89 = arith.addf %87, %88 : vector<8x128xf32>
    %c0_30 = arith.constant 0 : index
    %c0_31 = arith.constant 0 : index
    %90 = vector.load %arg10[%c0_30, %c0_31] : memref<4x128xf32, #tpu.memory_space<vmem>>, vector<4x128xf32>
    %91 = vector.extract_strided_slice %90 {offsets = [0, 0], sizes = [1, 128], strides = [1, 1]} : vector<4x128xf32> to vector<1x128xf32>
    %92 = vector.extract_strided_slice %90 {offsets = [1, 0], sizes = [1, 128], strides = [1, 1]} : vector<4x128xf32> to vector<1x128xf32>
    %93 = vector.extract_strided_slice %90 {offsets = [2, 0], sizes = [1, 128], strides = [1, 1]} : vector<4x128xf32> to vector<1x128xf32>
    %94 = vector.extract_strided_slice %90 {offsets = [3, 0], sizes = [1, 128], strides = [1, 1]} : vector<4x128xf32> to vector<1x128xf32>
    %95 = arith.truncf %89 : vector<8x128xf32> to vector<8x128xbf16>
    %c0_32 = arith.constant 0 : index
    %c0_33 = arith.constant 0 : index
    %96 = vector.load %arg8[%c0_32, %c0_33] : memref<128x128xbf16, #tpu.memory_space<vmem>>, vector<128x128xbf16>
    %cst_34 = arith.constant dense<0.000000e+00> : vector<8x128xf32>
    %97 = tpu.matmul %95, %96, %cst_34 {dimension_numbers = #tpu.dot_dimension_numbers<[1], [0], [0], [1], [0, 0, 1, 1], [], []>} : vector<8x128xbf16>, vector<128x128xbf16>, vector<8x128xf32> -> vector<8x128xf32>
    %98 = vector.broadcast %91 : vector<1x128xf32> to vector<8x128xf32>
    %99 = arith.addf %97, %98 : vector<8x128xf32>
    %cst_35 = arith.constant -1.702000e+00 : f32
    %100 = vector.broadcast %cst_35 : f32 to vector<8x128xf32>
    %101 = arith.mulf %100, %99 : vector<8x128xf32>
    %102 = math.exp %101 : vector<8x128xf32>
    %cst_36 = arith.constant 1.000000e+00 : f32
    %103 = vector.broadcast %cst_36 : f32 to vector<8x128xf32>
    %104 = arith.addf %103, %102 : vector<8x128xf32>
    %105 = tpu.reciprocal %104 {approx = true} : vector<8x128xf32> -> vector<8x128xf32>
    %106 = arith.mulf %99, %105 : vector<8x128xf32>
    %107 = arith.truncf %106 : vector<8x128xf32> to vector<8x128xbf16>
    %c0_37 = arith.constant 0 : index
    %c0_38 = arith.constant 0 : index
    %108 = vector.load %arg9[%c0_37, %c0_38] : memref<128x128xbf16, #tpu.memory_space<vmem>>, vector<128x128xbf16>
    %cst_39 = arith.constant dense<0.000000e+00> : vector<8x128xf32>
    %109 = tpu.matmul %107, %108, %cst_39 {dimension_numbers = #tpu.dot_dimension_numbers<[1], [0], [0], [1], [0, 0, 1, 1], [], []>} : vector<8x128xbf16>, vector<128x128xbf16>, vector<8x128xf32> -> vector<8x128xf32>
    %110 = vector.broadcast %92 : vector<1x128xf32> to vector<8x128xf32>
    %111 = arith.addf %109, %110 : vector<8x128xf32>
    %112 = arith.addf %99, %111 : vector<8x128xf32>
    %cst_40 = arith.constant dense<0.000000e+00> : vector<8xf32>
    %113 = vector.multi_reduction <add>, %112, %cst_40 [1] : vector<8x128xf32> to vector<8xf32>
    %114 = vector.shape_cast %113 : vector<8xf32> to vector<8x1xf32>
    %cst_41 = arith.constant 6.250000e-02 : f32
    %115 = vector.broadcast %cst_41 : f32 to vector<8x1xf32>
    %116 = arith.mulf %114, %115 : vector<8x1xf32>
    %117 = arith.mulf %112, %112 : vector<8x128xf32>
    %cst_42 = arith.constant dense<0.000000e+00> : vector<8xf32>
    %118 = vector.multi_reduction <add>, %117, %cst_42 [1] : vector<8x128xf32> to vector<8xf32>
    %119 = vector.shape_cast %118 : vector<8xf32> to vector<8x1xf32>
    %cst_43 = arith.constant 6.250000e-02 : f32
    %120 = vector.broadcast %cst_43 : f32 to vector<8x1xf32>
    %121 = arith.mulf %119, %120 : vector<8x1xf32>
    %122 = arith.mulf %116, %116 : vector<8x1xf32>
    %123 = arith.subf %121, %122 : vector<8x1xf32>
    %124 = vector.broadcast %116 : vector<8x1xf32> to vector<8x128xf32>
    %125 = arith.subf %112, %124 : vector<8x128xf32>
    %cst_44 = arith.constant 9.99999974E-6 : f32
    %126 = vector.broadcast %cst_44 : f32 to vector<8x1xf32>
    %127 = arith.addf %123, %126 : vector<8x1xf32>
    %128 = math.rsqrt %127 : vector<8x1xf32>
    %129 = vector.broadcast %128 : vector<8x1xf32> to vector<8x128xf32>
    %130 = arith.mulf %125, %129 : vector<8x128xf32>
    %131 = vector.broadcast %93 : vector<1x128xf32> to vector<8x128xf32>
    %132 = arith.mulf %130, %131 : vector<8x128xf32>
    %133 = vector.broadcast %94 : vector<1x128xf32> to vector<8x128xf32>
    %134 = arith.addf %132, %133 : vector<8x128xf32>
    %135 = tpu.iota {dimensions = array<i32: 1>} : vector<8x128xi32>
    %c16_i32 = arith.constant 16 : i32
    %136 = vector.broadcast %c16_i32 : i32 to vector<8x128xi32>
    %137 = arith.cmpi slt, %135, %136 : vector<8x128xi32>
    %cst_45 = arith.constant -1.000000e+30 : f32
    %138 = vector.broadcast %cst_45 : f32 to vector<8x128xf32>
    %139 = arith.select %137, %134, %138 : vector<8x128xi1>, vector<8x128xf32>
    %cst_46 = arith.constant dense<0xFF800000> : vector<8xf32>
    %140 = vector.multi_reduction <maximumf>, %139, %cst_46 [1] : vector<8x128xf32> to vector<8xf32>
    %141 = vector.shape_cast %140 : vector<8xf32> to vector<8x1xf32>
    %142 = vector.broadcast %141 : vector<8x1xf32> to vector<8x128xf32>
    %143 = arith.subf %139, %142 : vector<8x128xf32>
    %144 = math.exp %143 : vector<8x128xf32>
    %cst_47 = arith.constant dense<0.000000e+00> : vector<8xf32>
    %145 = vector.multi_reduction <add>, %144, %cst_47 [1] : vector<8x128xf32> to vector<8xf32>
    %146 = vector.shape_cast %145 : vector<8xf32> to vector<8x1xf32>
    %147 = math.log %146 : vector<8x1xf32>
    %148 = vector.broadcast %147 : vector<8x1xf32> to vector<8x128xf32>
    %149 = arith.subf %143, %148 : vector<8x128xf32>
    %c0_48 = arith.constant 0 : index
    %c0_49 = arith.constant 0 : index
    %150 = vector.load %arg11[%c0_48, %c0_49] : memref<8x128xf32, #tpu.memory_space<vmem>>, vector<8x128xf32>
    tpu.vector_store %arg11[%c0_48, %c0_49], %149 {strides = array<i32>} : memref<8x128xf32, #tpu.memory_space<vmem>>, vector<8x128xf32>,
    return
  }
  func.func @transform_0(%arg0: i32) -> (i32, i32) {
    %c0_i32 = arith.constant 0 : i32
    %c0_i32_0 = arith.constant 0 : i32
    return %arg0, %c0_i32 : i32, i32
  }
  func.func @transform_1(%arg0: i32) -> (i32, i32) {
    %c0_i32 = arith.constant 0 : i32
    %c0_i32_0 = arith.constant 0 : i32
    %c0_i32_1 = arith.constant 0 : i32
    return %c0_i32, %c0_i32_0 : i32, i32
  }
  func.func @transform_2(%arg0: i32) -> (i32, i32) {
    %c0_i32 = arith.constant 0 : i32
    %c0_i32_0 = arith.constant 0 : i32
    %c0_i32_1 = arith.constant 0 : i32
    return %c0_i32, %c0_i32_0 : i32, i32
  }
  func.func @transform_3(%arg0: i32) -> (i32, i32) {
    %c0_i32 = arith.constant 0 : i32
    %c0_i32_0 = arith.constant 0 : i32
    %c0_i32_1 = arith.constant 0 : i32
    return %c0_i32, %c0_i32_0 : i32, i32
  }
  func.func @transform_4(%arg0: i32) -> (i32, i32) {
    %c0_i32 = arith.constant 0 : i32
    %c0_i32_0 = arith.constant 0 : i32
    %c0_i32_1 = arith.constant 0 : i32
    return %c0_i32, %c0_i32_0 : i32, i32
  }
  func.func @transform_5(%arg0: i32) -> (i32, i32) {
    %c0_i32 = arith.constant 0 : i32
    %c0_i32_0 = arith.constant 0 : i32
    %c0_i32_1 = arith.constant 0 : i32
    return %c0_i32, %c0_i32_0 : i32, i32
  }
  func.func @transform_6(%arg0: i32) -> (i32, i32) {
    %c0_i32 = arith.constant 0 : i32
    %c0_i32_0 = arith.constant 0 : i32
    %c0_i32_1 = arith.constant 0 : i32
    return %c0_i32, %c0_i32_0 : i32, i32
  }
  func.func @transform_7(%arg0: i32) -> (i32, i32) {
    %c0_i32 = arith.constant 0 : i32
    %c0_i32_0 = arith.constant 0 : i32
    %c0_i32_1 = arith.constant 0 : i32
    return %c0_i32, %c0_i32_0 : i32, i32
  }
  func.func @transform_8(%arg0: i32) -> (i32, i32) {
    %c0_i32 = arith.constant 0 : i32
    %c0_i32_0 = arith.constant 0 : i32
    %c0_i32_1 = arith.constant 0 : i32
    return %c0_i32, %c0_i32_0 : i32, i32
  }
  func.func @transform_9(%arg0: i32) -> (i32, i32) {
    %c0_i32 = arith.constant 0 : i32
    %c0_i32_0 = arith.constant 0 : i32
    %c0_i32_1 = arith.constant 0 : i32
    return %c0_i32, %c0_i32_0 : i32, i32
  }
  func.func @transform_10(%arg0: i32) -> (i32, i32) {
    %c0_i32 = arith.constant 0 : i32
    %c0_i32_0 = arith.constant 0 : i32
    return %arg0, %c0_i32 : i32, i32
  }
}

module attributes {stable_mosaic.version = 11 : i64} {
  func.func @kernel(%arg0: i32, %arg1: memref<8x128xbf16, #tpu.memory_space<vmem>>, %arg2: memref<128x128xbf16, #tpu.memory_space<vmem>>, %arg3: memref<128x128xbf16, #tpu.memory_space<vmem>>, %arg4: memref<4x128xf32, #tpu.memory_space<vmem>>, %arg5: memref<128x128xbf16, #tpu.memory_space<vmem>>, %arg6: memref<128x128xbf16, #tpu.memory_space<vmem>>, %arg7: memref<4x128xf32, #tpu.memory_space<vmem>>, %arg8: memref<128x128xbf16, #tpu.memory_space<vmem>>, %arg9: memref<128x128xbf16, #tpu.memory_space<vmem>>, %arg10: memref<4x128xf32, #tpu.memory_space<vmem>>, %arg11: memref<8x128xf32, #tpu.memory_space<vmem>>) attributes {dimension_semantics = [#tpu.dimension_semantics<parallel>], iteration_bounds = array<i64: 1>, scalar_prefetch = 0 : i64, scratch_operands = 0 : i64, tpu.core_type = #tpu.core_type<tc>, window_params = [{transform_indices = @transform_0, window_bounds = array<i64: 8, 128>}, {pipeline_mode = #tpu.pipeline_mode<synchronous>, transform_indices = @transform_1, window_bounds = array<i64: 128, 128>}, {pipeline_mode = #tpu.pipeline_mode<synchronous>, transform_indices = @transform_2, window_bounds = array<i64: 128, 128>}, {pipeline_mode = #tpu.pipeline_mode<synchronous>, transform_indices = @transform_3, window_bounds = array<i64: 4, 128>}, {pipeline_mode = #tpu.pipeline_mode<synchronous>, transform_indices = @transform_4, window_bounds = array<i64: 128, 128>}, {pipeline_mode = #tpu.pipeline_mode<synchronous>, transform_indices = @transform_5, window_bounds = array<i64: 128, 128>}, {pipeline_mode = #tpu.pipeline_mode<synchronous>, transform_indices = @transform_6, window_bounds = array<i64: 4, 128>}, {pipeline_mode = #tpu.pipeline_mode<synchronous>, transform_indices = @transform_7, window_bounds = array<i64: 128, 128>}, {pipeline_mode = #tpu.pipeline_mode<synchronous>, transform_indices = @transform_8, window_bounds = array<i64: 128, 128>}, {pipeline_mode = #tpu.pipeline_mode<synchronous>, transform_indices = @transform_9, window_bounds = array<i64: 4, 128>}, {transform_indices = @transform_10, window_bounds = array<i64: 8, 128>}]} {
    %c0 = arith.constant 0 : index
    %c0_0 = arith.constant 0 : index
    %0 = vector.load %arg1[%c0, %c0_0] : memref<8x128xbf16, #tpu.memory_space<vmem>>, vector<8x128xbf16>
    %c0_1 = arith.constant 0 : index
    %c0_2 = arith.constant 0 : index
    %1 = vector.load %arg4[%c0_1, %c0_2] : memref<4x128xf32, #tpu.memory_space<vmem>>, vector<4x128xf32>
    %2 = vector.extract_strided_slice %1 {offsets = [0, 0], sizes = [1, 128], strides = [1, 1]} : vector<4x128xf32> to vector<1x128xf32>
    %3 = vector.extract_strided_slice %1 {offsets = [1, 0], sizes = [1, 128], strides = [1, 1]} : vector<4x128xf32> to vector<1x128xf32>
    %4 = vector.extract_strided_slice %1 {offsets = [2, 0], sizes = [1, 128], strides = [1, 1]} : vector<4x128xf32> to vector<1x128xf32>
    %5 = vector.extract_strided_slice %1 {offsets = [3, 0], sizes = [1, 128], strides = [1, 1]} : vector<4x128xf32> to vector<1x128xf32>
    %c0_3 = arith.constant 0 : index
    %c0_4 = arith.constant 0 : index
    %6 = vector.load %arg2[%c0_3, %c0_4] : memref<128x128xbf16, #tpu.memory_space<vmem>>, vector<128x128xbf16>
    %cst = arith.constant dense<0.000000e+00> : vector<8x128xf32>
    %7 = tpu.matmul %0, %6, %cst {dimension_numbers = #tpu.dot_dimension_numbers<[1], [0], [0], [1], [0, 0, 1, 1], [], []>} : vector<8x128xbf16>, vector<128x128xbf16>, vector<8x128xf32> -> vector<8x128xf32>
    %8 = vector.broadcast %2 : vector<1x128xf32> to vector<8x128xf32>
    %9 = arith.addf %7, %8 : vector<8x128xf32>
    %cst_5 = arith.constant -1.702000e+00 : f32
    %10 = vector.broadcast %cst_5 : f32 to vector<8x128xf32>
    %11 = arith.mulf %10, %9 : vector<8x128xf32>
    %12 = math.exp %11 : vector<8x128xf32>
    %cst_6 = arith.constant 1.000000e+00 : f32
    %13 = vector.broadcast %cst_6 : f32 to vector<8x128xf32>
    %14 = arith.addf %13, %12 : vector<8x128xf32>
    %15 = tpu.reciprocal %14 {approx = true} : vector<8x128xf32> -> vector<8x128xf32>
    %16 = arith.mulf %9, %15 : vector<8x128xf32>
    %17 = arith.truncf %16 : vector<8x128xf32> to vector<8x128xbf16>
    %c0_7 = arith.constant 0 : index
    %c0_8 = arith.constant 0 : index
    %18 = vector.load %arg3[%c0_7, %c0_8] : memref<128x128xbf16, #tpu.memory_space<vmem>>, vector<128x128xbf16>
    %cst_9 = arith.constant dense<0.000000e+00> : vector<8x128xf32>
    %19 = tpu.matmul %17, %18, %cst_9 {dimension_numbers = #tpu.dot_dimension_numbers<[1], [0], [0], [1], [0, 0, 1, 1], [], []>} : vector<8x128xbf16>, vector<128x128xbf16>, vector<8x128xf32> -> vector<8x128xf32>
    %20 = vector.broadcast %3 : vector<1x128xf32> to vector<8x128xf32>
    %21 = arith.addf %19, %20 : vector<8x128xf32>
    %22 = arith.addf %9, %21 : vector<8x128xf32>
    %cst_10 = arith.constant dense<0.000000e+00> : vector<8xf32>
    %23 = vector.multi_reduction <add>, %22, %cst_10 [1] : vector<8x128xf32> to vector<8xf32>
    %24 = vector.shape_cast %23 : vector<8xf32> to vector<8x1xf32>
    %cst_11 = arith.constant 3.125000e-02 : f32
    %25 = vector.broadcast %cst_11 : f32 to vector<8x1xf32>
    %26 = arith.mulf %24, %25 : vector<8x1xf32>
    %27 = arith.mulf %22, %22 : vector<8x128xf32>
    %cst_12 = arith.constant dense<0.000000e+00> : vector<8xf32>
    %28 = vector.multi_reduction <add>, %27, %cst_12 [1] : vector<8x128xf32> to vector<8xf32>
    %29 = vector.shape_cast %28 : vector<8xf32> to vector<8x1xf32>
    %cst_13 = arith.constant 3.125000e-02 : f32
    %30 = vector.broadcast %cst_13 : f32 to vector<8x1xf32>
    %31 = arith.mulf %29, %30 : vector<8x1xf32>
    %32 = arith.mulf %26, %26 : vector<8x1xf32>
    %33 = arith.subf %31, %32 : vector<8x1xf32>
    %34 = vector.broadcast %26 : vector<8x1xf32> to vector<8x128xf32>
    %35 = arith.subf %22, %34 : vector<8x128xf32>
    %cst_14 = arith.constant 9.99999974E-6 : f32
    %36 = vector.broadcast %cst_14 : f32 to vector<8x1xf32>
    %37 = arith.addf %33, %36 : vector<8x1xf32>
    %38 = math.rsqrt %37 : vector<8x1xf32>
    %39 = vector.broadcast %38 : vector<8x1xf32> to vector<8x128xf32>
    %40 = arith.mulf %35, %39 : vector<8x128xf32>
    %41 = vector.broadcast %4 : vector<1x128xf32> to vector<8x128xf32>
    %42 = arith.mulf %40, %41 : vector<8x128xf32>
    %43 = vector.broadcast %5 : vector<1x128xf32> to vector<8x128xf32>
    %44 = arith.addf %42, %43 : vector<8x128xf32>
    %c0_15 = arith.constant 0 : index
    %c0_16 = arith.constant 0 : index
    %45 = vector.load %arg7[%c0_15, %c0_16] : memref<4x128xf32, #tpu.memory_space<vmem>>, vector<4x128xf32>
    %46 = vector.extract_strided_slice %45 {offsets = [0, 0], sizes = [1, 128], strides = [1, 1]} : vector<4x128xf32> to vector<1x128xf32>
    %47 = vector.extract_strided_slice %45 {offsets = [1, 0], sizes = [1, 128], strides = [1, 1]} : vector<4x128xf32> to vector<1x128xf32>
    %48 = vector.extract_strided_slice %45 {offsets = [2, 0], sizes = [1, 128], strides = [1, 1]} : vector<4x128xf32> to vector<1x128xf32>
    %49 = vector.extract_strided_slice %45 {offsets = [3, 0], sizes = [1, 128], strides = [1, 1]} : vector<4x128xf32> to vector<1x128xf32>
    %50 = arith.truncf %44 : vector<8x128xf32> to vector<8x128xbf16>
    %c0_17 = arith.constant 0 : index
    %c0_18 = arith.constant 0 : index
    %51 = vector.load %arg5[%c0_17, %c0_18] : memref<128x128xbf16, #tpu.memory_space<vmem>>, vector<128x128xbf16>
    %cst_19 = arith.constant dense<0.000000e+00> : vector<8x128xf32>
    %52 = tpu.matmul %50, %51, %cst_19 {dimension_numbers = #tpu.dot_dimension_numbers<[1], [0], [0], [1], [0, 0, 1, 1], [], []>} : vector<8x128xbf16>, vector<128x128xbf16>, vector<8x128xf32> -> vector<8x128xf32>
    %53 = vector.broadcast %46 : vector<1x128xf32> to vector<8x128xf32>
    %54 = arith.addf %52, %53 : vector<8x128xf32>
    %cst_20 = arith.constant -1.702000e+00 : f32
    %55 = vector.broadcast %cst_20 : f32 to vector<8x128xf32>
    %56 = arith.mulf %55, %54 : vector<8x128xf32>
    %57 = math.exp %56 : vector<8x128xf32>
    %cst_21 = arith.constant 1.000000e+00 : f32
    %58 = vector.broadcast %cst_21 : f32 to vector<8x128xf32>
    %59 = arith.addf %58, %57 : vector<8x128xf32>
    %60 = tpu.reciprocal %59 {approx = true} : vector<8x128xf32> -> vector<8x128xf32>
    %61 = arith.mulf %54, %60 : vector<8x128xf32>
    %62 = arith.truncf %61 : vector<8x128xf32> to vector<8x128xbf16>
    %c0_22 = arith.constant 0 : index
    %c0_23 = arith.constant 0 : index
    %63 = vector.load %arg6[%c0_22, %c0_23] : memref<128x128xbf16, #tpu.memory_space<vmem>>, vector<128x128xbf16>
    %cst_24 = arith.constant dense<0.000000e+00> : vector<8x128xf32>
    %64 = tpu.matmul %62, %63, %cst_24 {dimension_numbers = #tpu.dot_dimension_numbers<[1], [0], [0], [1], [0, 0, 1, 1], [], []>} : vector<8x128xbf16>, vector<128x128xbf16>, vector<8x128xf32> -> vector<8x128xf32>
    %65 = vector.broadcast %47 : vector<1x128xf32> to vector<8x128xf32>
    %66 = arith.addf %64, %65 : vector<8x128xf32>
    %67 = arith.addf %54, %66 : vector<8x128xf32>
    %cst_25 = arith.constant dense<0.000000e+00> : vector<8xf32>
    %68 = vector.multi_reduction <add>, %67, %cst_25 [1] : vector<8x128xf32> to vector<8xf32>
    %69 = vector.shape_cast %68 : vector<8xf32> to vector<8x1xf32>
    %cst_26 = arith.constant 3.125000e-02 : f32
    %70 = vector.broadcast %cst_26 : f32 to vector<8x1xf32>
    %71 = arith.mulf %69, %70 : vector<8x1xf32>
    %72 = arith.mulf %67, %67 : vector<8x128xf32>
    %cst_27 = arith.constant dense<0.000000e+00> : vector<8xf32>
    %73 = vector.multi_reduction <add>, %72, %cst_27 [1] : vector<8x128xf32> to vector<8xf32>
    %74 = vector.shape_cast %73 : vector<8xf32> to vector<8x1xf32>
    %cst_28 = arith.constant 3.125000e-02 : f32
    %75 = vector.broadcast %cst_28 : f32 to vector<8x1xf32>
    %76 = arith.mulf %74, %75 : vector<8x1xf32>
    %77 = arith.mulf %71, %71 : vector<8x1xf32>
    %78 = arith.subf %76, %77 : vector<8x1xf32>
    %79 = vector.broadcast %71 : vector<8x1xf32> to vector<8x128xf32>
    %80 = arith.subf %67, %79 : vector<8x128xf32>
    %cst_29 = arith.constant 9.99999974E-6 : f32
    %81 = vector.broadcast %cst_29 : f32 to vector<8x1xf32>
    %82 = arith.addf %78, %81 : vector<8x1xf32>
    %83 = math.rsqrt %82 : vector<8x1xf32>
    %84 = vector.broadcast %83 : vector<8x1xf32> to vector<8x128xf32>
    %85 = arith.mulf %80, %84 : vector<8x128xf32>
    %86 = vector.broadcast %48 : vector<1x128xf32> to vector<8x128xf32>
    %87 = arith.mulf %85, %86 : vector<8x128xf32>
    %88 = vector.broadcast %49 : vector<1x128xf32> to vector<8x128xf32>
    %89 = arith.addf %87, %88 : vector<8x128xf32>
    %c0_30 = arith.constant 0 : index
    %c0_31 = arith.constant 0 : index
    %90 = vector.load %arg10[%c0_30, %c0_31] : memref<4x128xf32, #tpu.memory_space<vmem>>, vector<4x128xf32>
    %91 = vector.extract_strided_slice %90 {offsets = [0, 0], sizes = [1, 128], strides = [1, 1]} : vector<4x128xf32> to vector<1x128xf32>
    %92 = vector.extract_strided_slice %90 {offsets = [1, 0], sizes = [1, 128], strides = [1, 1]} : vector<4x128xf32> to vector<1x128xf32>
    %93 = vector.extract_strided_slice %90 {offsets = [2, 0], sizes = [1, 128], strides = [1, 1]} : vector<4x128xf32> to vector<1x128xf32>
    %94 = vector.extract_strided_slice %90 {offsets = [3, 0], sizes = [1, 128], strides = [1, 1]} : vector<4x128xf32> to vector<1x128xf32>
    %95 = arith.truncf %89 : vector<8x128xf32> to vector<8x128xbf16>
    %c0_32 = arith.constant 0 : index
    %c0_33 = arith.constant 0 : index
    %96 = vector.load %arg8[%c0_32, %c0_33] : memref<128x128xbf16, #tpu.memory_space<vmem>>, vector<128x128xbf16>
    %cst_34 = arith.constant dense<0.000000e+00> : vector<8x128xf32>
    %97 = tpu.matmul %95, %96, %cst_34 {dimension_numbers = #tpu.dot_dimension_numbers<[1], [0], [0], [1], [0, 0, 1, 1], [], []>} : vector<8x128xbf16>, vector<128x128xbf16>, vector<8x128xf32> -> vector<8x128xf32>
    %98 = vector.broadcast %91 : vector<1x128xf32> to vector<8x128xf32>
    %99 = arith.addf %97, %98 : vector<8x128xf32>
    %cst_35 = arith.constant -1.702000e+00 : f32
    %100 = vector.broadcast %cst_35 : f32 to vector<8x128xf32>
    %101 = arith.mulf %100, %99 : vector<8x128xf32>
    %102 = math.exp %101 : vector<8x128xf32>
    %cst_36 = arith.constant 1.000000e+00 : f32
    %103 = vector.broadcast %cst_36 : f32 to vector<8x128xf32>
    %104 = arith.addf %103, %102 : vector<8x128xf32>
    %105 = tpu.reciprocal %104 {approx = true} : vector<8x128xf32> -> vector<8x128xf32>
    %106 = arith.mulf %99, %105 : vector<8x128xf32>
    %107 = arith.truncf %106 : vector<8x128xf32> to vector<8x128xbf16>
    %c0_37 = arith.constant 0 : index
    %c0_38 = arith.constant 0 : index
    %108 = vector.load %arg9[%c0_37, %c0_38] : memref<128x128xbf16, #tpu.memory_space<vmem>>, vector<128x128xbf16>
    %cst_39 = arith.constant dense<0.000000e+00> : vector<8x128xf32>
    %109 = tpu.matmul %107, %108, %cst_39 {dimension_numbers = #tpu.dot_dimension_numbers<[1], [0], [0], [1], [0, 0, 1, 1], [], []>} : vector<8x128xbf16>, vector<128x128xbf16>, vector<8x128xf32> -> vector<8x128xf32>
    %110 = vector.broadcast %92 : vector<1x128xf32> to vector<8x128xf32>
    %111 = arith.addf %109, %110 : vector<8x128xf32>
    %112 = arith.addf %99, %111 : vector<8x128xf32>
    %cst_40 = arith.constant dense<0.000000e+00> : vector<8xf32>
    %113 = vector.multi_reduction <add>, %112, %cst_40 [1] : vector<8x128xf32> to vector<8xf32>
    %114 = vector.shape_cast %113 : vector<8xf32> to vector<8x1xf32>
    %cst_41 = arith.constant 6.250000e-02 : f32
    %115 = vector.broadcast %cst_41 : f32 to vector<8x1xf32>
    %116 = arith.mulf %114, %115 : vector<8x1xf32>
    %117 = arith.mulf %112, %112 : vector<8x128xf32>
    %cst_42 = arith.constant dense<0.000000e+00> : vector<8xf32>
    %118 = vector.multi_reduction <add>, %117, %cst_42 [1] : vector<8x128xf32> to vector<8xf32>
    %119 = vector.shape_cast %118 : vector<8xf32> to vector<8x1xf32>
    %cst_43 = arith.constant 6.250000e-02 : f32
    %120 = vector.broadcast %cst_43 : f32 to vector<8x1xf32>
    %121 = arith.mulf %119, %120 : vector<8x1xf32>
    %122 = arith.mulf %116, %116 : vector<8x1xf32>
    %123 = arith.subf %121, %122 : vector<8x1xf32>
    %124 = vector.broadcast %116 : vector<8x1xf32> to vector<8x128xf32>
    %125 = arith.subf %112, %124 : vector<8x128xf32>
    %cst_44 = arith.constant 9.99999974E-6 : f32
    %126 = vector.broadcast %cst_44 : f32 to vector<8x1xf32>
    %127 = arith.addf %123, %126 : vector<8x1xf32>
    %128 = math.rsqrt %127 : vector<8x1xf32>
    %129 = vector.broadcast %128 : vector<8x1xf32> to vector<8x128xf32>
    %130 = arith.mulf %125, %129 : vector<8x128xf32>
    %131 = vector.broadcast %93 : vector<1x128xf32> to vector<8x128xf32>
    %132 = arith.mulf %130, %131 : vector<8x128xf32>
    %133 = vector.broadcast %94 : vector<1x128xf32> to vector<8x128xf32>
    %134 = arith.addf %132, %133 : vector<8x128xf32>
    %135 = tpu.iota {dimensions = array<i32: 1>} : vector<8x128xi32>
    %c16_i32 = arith.constant 16 : i32
    %136 = vector.broadcast %c16_i32 : i32 to vector<8x128xi32>
    %137 = arith.cmpi slt, %135, %136 : vector<8x128xi32>
    %cst_45 = arith.constant -1.000000e+30 : f32
    %138 = vector.broadcast %cst_45 : f32 to vector<8x128xf32>
    %139 = arith.select %137, %134, %138 : vector<8x128xi1>, vector<8x128xf32>
    %cst_46 = arith.constant dense<0xFF800000> : vector<8xf32>
    %140 = vector.multi_reduction <maximumf>, %139, %cst_46 [1] : vector<8x128xf32> to vector<8xf32>
    %141 = vector.shape_cast %140 : vector<8xf32> to vector<8x1xf32>
    %142 = vector.broadcast %141 : vector<8x1xf32> to vector<8x128xf32>
    %143 = arith.subf %139, %142 : vector<8x128xf32>
    %144 = math.exp %143 : vector<8x128xf32>
    %cst_47 = arith.constant dense<0.000000e+00> : vector<8xf32>
    %145 = vector.multi_reduction <add>, %144, %cst_47 [1] : vector<8x128xf32> to vector<8xf32>
    %146 = vector.shape_cast %145 : vector<8xf32> to vector<8x1xf32>
    %147 = math.log %146 : vector<8x1xf32>
    %148 = vector.broadcast %147 : vector<8x1xf32> to vector<8x128xf32>
    %149 = arith.subf %143, %148 : vector<8x128xf32>
    %c0_48 = arith.constant 0 : index
    %c0_49 = arith.constant 0 : index
    %150 = vector.load %arg11[%c0_48, %c0_49] : memref<8x128xf32, #tpu.memory_space<vmem>>, vector<8x128xf32>
    tpu.vector_store %arg11[%c0_48, %c0_49], %149 {strides = array<i32>} : memref<8x128xf32, #tpu.memory_space<vmem>>, vector<8x128xf32>,
    return
  }
  func.func @transform_0(%arg0: i32) -> (i32, i32) {
    %c0_i32 = arith.constant 0 : i32
    %c0_i32_0 = arith.constant 0 : i32
    return %arg0, %c0_i32 : i32, i32
  }
  func.func @transform_1(%arg0: i32) -> (i32, i32) {
    %c0_i32 = arith.constant 0 : i32
    %c0_i32_0 = arith.constant 0 : i32
    %c0_i32_1 = arith.constant 0 : i32
    return %c0_i32, %c0_i32_0 : i32, i32
  }
  func.func @transform_2(%arg0: i32) -> (i32, i32) {
    %c0_i32 = arith.constant 0 : i32
    %c0_i32_0 = arith.constant 0 : i32
    %c0_i32_1 = arith.constant 0 : i32
    return %c0_i32, %c0_i32_0 : i32, i32
  }
  func.func @transform_3(%arg0: i32) -> (i32, i32) {
    %c0_i32 = arith.constant 0 : i32
    %c0_i32_0 = arith.constant 0 : i32
    %c0_i32_1 = arith.constant 0 : i32
    return %c0_i32, %c0_i32_0 : i32, i32
  }
  func.func @transform_4(%arg0: i32) -> (i32, i32) {
    %c0_i32 = arith.constant 0 : i32
    %c0_i32_0 = arith.constant 0 : i32
    %c0_i32_1 = arith.constant 0 : i32
    return %c0_i32, %c0_i32_0 : i32, i32
  }
  func.func @transform_5(%arg0: i32) -> (i32, i32) {
    %c0_i32 = arith.constant 0 : i32
    %c0_i32_0 = arith.constant 0 : i32
    %c0_i32_1 = arith.constant 0 : i32
    return %c0_i32, %c0_i32_0 : i32, i32
  }
  func.func @transform_6(%arg0: i32) -> (i32, i32) {
    %c0_i32 = arith.constant 0 : i32
    %c0_i32_0 = arith.constant 0 : i32
    %c0_i32_1 = arith.constant 0 : i32
    return %c0_i32, %c0_i32_0 : i32, i32
  }
  func.func @transform_7(%arg0: i32) -> (i32, i32) {
    %c0_i32 = arith.constant 0 : i32
    %c0_i32_0 = arith.constant 0 : i32
    %c0_i32_1 = arith.constant 0 : i32
    return %c0_i32, %c0_i32_0 : i32, i32
  }
  func.func @transform_8(%arg0: i32) -> (i32, i32) {
    %c0_i32 = arith.constant 0 : i32
    %c0_i32_0 = arith.constant 0 : i32
    %c0_i32_1 = arith.constant 0 : i32
    return %c0_i32, %c0_i32_0 : i32, i32
  }
  func.func @transform_9(%arg0: i32) -> (i32, i32) {
    %c0_i32 = arith.constant 0 : i32
    %c0_i32_0 = arith.constant 0 : i32
    %c0_i32_1 = arith.constant 0 : i32
    return %c0_i32, %c0_i32_0 : i32, i32
  }
  func.func @transform_10(%arg0: i32) -> (i32, i32) {
    %c0_i32 = arith.constant 0 : i32
    %c0_i32_0 = arith.constant 0 : i32
    return %arg0, %c0_i32 : i32, i32
  }
}

</mosaic_0001>

<llo_original>
// kernel: tpu_custom_call.1
$region0: #{tpu_custom_call.1}
  #allocation0 [shape = 'u32[]', space=smem, size = 0x4, offset = 0x4, fixed_abs, tag = 'smem constant byte address 0x4 - core index']
  #allocation1 [shape = 'u32[144,128]{1,0:T(1,128)}', space=vmem, size = 0x12000, scoped, tag = 'internal scratch']
  %s0 = inlined_call_operand.hbm [shape: bf16[8,128], index: 0, kind: input, shape index: {}]
  %s1 = inlined_call_operand.hbm [shape: bf16[128,128], index: 1, kind: input, shape index: {}]
  %s2 = inlined_call_operand.hbm [shape: bf16[128,128], index: 2, kind: input, shape index: {}]
  %s3 = inlined_call_operand.vmem [shape: f32[4,128], index: 3, kind: input, shape index: {}]
  %s4 = inlined_call_operand.hbm [shape: bf16[128,128], index: 4, kind: input, shape index: {}]
  %s5 = inlined_call_operand.hbm [shape: bf16[128,128], index: 5, kind: input, shape index: {}]
  %s6 = inlined_call_operand.vmem [shape: f32[4,128], index: 6, kind: input, shape index: {}]
  %s7 = inlined_call_operand.hbm [shape: bf16[128,128], index: 7, kind: input, shape index: {}]
  %s8 = inlined_call_operand.hbm [shape: bf16[128,128], index: 8, kind: input, shape index: {}]
  %s9 = inlined_call_operand.vmem [shape: f32[4,128], index: 9, kind: input, shape index: {}]
  %s10 = inlined_call_operand.hbm [shape: f32[8,128], index: 10, kind: output, shape index: {}]
  %s11 = sld [smem:[#allocation0]]
  $region78: #{tpu_custom_call.1} parent=0
    _
  %s13 = ssub.s32 1, %s11
  %s14 = scalar_select 0, %s13, %s11
  $region1: #{tpu_custom_call.1} parent=0
    #allocation2 [shape = 'u8[2048]{0}', space=vmem, size = 0x800, scoped, tag = 'input window, operand 0, single buffered']
    #allocation3 [shape = 's32[1]{0}', space=sflag, size = 0x4, scoped, tag = 'scoped memory for tpu_custom_call.1']
    #allocation4 [shape = 's32[1]{0}', space=sflag, size = 0x4, scoped, tag = 'scoped memory for tpu_custom_call.1']
    #allocation5 [shape = 'u8[32768]{0}', space=vmem, size = 0x8000, scoped, tag = 'input window, operand 1, single buffered']
    #allocation6 [shape = 's32[1]{0}', space=sflag, size = 0x4, scoped, tag = 'scoped memory for tpu_custom_call.1']
    #allocation7 [shape = 'u8[32768]{0}', space=vmem, size = 0x8000, scoped, tag = 'input window, operand 2, single buffered']
    #allocation8 [shape = 'u8[32768]{0}', space=vmem, size = 0x8000, scoped, tag = 'input window, operand 4, single buffered']
    #allocation9 [shape = 's32[1]{0}', space=sflag, size = 0x4, scoped, tag = 'scoped memory for tpu_custom_call.1']
    #allocation10 [shape = 'u8[32768]{0}', space=vmem, size = 0x8000, scoped, tag = 'input window, operand 5, single buffered']
    #allocation11 [shape = 'u8[32768]{0}', space=vmem, size = 0x8000, scoped, tag = 'input window, operand 7, single buffered']
    #allocation12 [shape = 's32[1]{0}', space=sflag, size = 0x4, scoped, tag = 'scoped memory for tpu_custom_call.1']
    #allocation13 [shape = 'u8[32768]{0}', space=vmem, size = 0x8000, scoped, tag = 'input window, operand 8, single buffered']
    #allocation14 [shape = 'u8[4096]{0}', space=vmem, size = 0x1000, scoped, tag = 'output window, operand 0, single buffered']
    %15 = vsyncpa [#allocation3], 0
    %16 = vsyncpa [#allocation6], 0
    %17 = vsyncpa [#allocation9], 0
    %18 = vsyncpa [#allocation12], 0
    %19 = vsyncpa [#allocation4], 0
    // Predicated region
    $region2: #{tpu_custom_call.1} parent=1 // pred_check
      _
    $region3: #{tpu_custom_call.1} parent=1 // pred_check_branch
      %21 = sbr.rel (0) target = $region5
    $region4: #{tpu_custom_call.1} parent=1 // pred_region
      %s23 = ssub.s32 64, 64
      %24 = vsyncadd [#allocation3], %s23
      %s26 = sshll.u32 [#allocation2], 4
      %s27 = int_to_ptr.vmem [resolvable:$true] %s26
      %29 = dma.hbm_to_vmem [thread:$0]  %s0, 64, %s27, [#allocation3]
    $region5: #{tpu_custom_call.1} parent=1 // pred_fallthru
      _
    // Predicated region
    $region6: #{tpu_custom_call.1} parent=1 // pred_check
      _
    $region7: #{tpu_custom_call.1} parent=1 // pred_check_branch
      %31 = sbr.rel (0) target = $region9
    $region8: #{tpu_custom_call.1} parent=1 // pred_region
      %s33 = ssub.s32 1024, 1024
      %34 = vsyncadd [#allocation6], %s33
      %s35 = sshll.u32 [#allocation5], 4
      %s36 = int_to_ptr.vmem [resolvable:$true] %s35
      %41 = dma.hbm_to_vmem [thread:$0]  %s1, 1024, %s36, [#allocation6], 64, 64, 4
    $region9: #{tpu_custom_call.1} parent=1 // pred_fallthru
      _
    // Predicated region
    $region10: #{tpu_custom_call.1} parent=1 // pred_check
      _
    $region11: #{tpu_custom_call.1} parent=1 // pred_check_branch
      %43 = sbr.rel (0) target = $region13
    $region12: #{tpu_custom_call.1} parent=1 // pred_region
      %s45 = ssub.s32 1024, 1024
      %46 = vsyncadd [#allocation6], %s45
      %s47 = sshll.u32 [#allocation7], 4
      %s48 = int_to_ptr.vmem [resolvable:$true] %s47
      %53 = dma.hbm_to_vmem [thread:$0]  %s2, 1024, %s48, [#allocation6], 64, 64, 4
    $region13: #{tpu_custom_call.1} parent=1 // pred_fallthru
      _
    // Predicated region
    $region14: #{tpu_custom_call.1} parent=1 // pred_check
      _
    $region15: #{tpu_custom_call.1} parent=1 // pred_check_branch
      %55 = sbr.rel (0) target = $region17
    $region16: #{tpu_custom_call.1} parent=1 // pred_region
      _
    $region17: #{tpu_custom_call.1} parent=1 // pred_fallthru
      _
    // Predicated region
    $region18: #{tpu_custom_call.1} parent=1 // pred_check
      _
    $region19: #{tpu_custom_call.1} parent=1 // pred_check_branch
      %57 = sbr.rel (0) target = $region21
    $region20: #{tpu_custom_call.1} parent=1 // pred_region
      %s59 = ssub.s32 1024, 1024
      %60 = vsyncadd [#allocation9], %s59
      %s61 = sshll.u32 [#allocation8], 4
      %s62 = int_to_ptr.vmem [resolvable:$true] %s61
      %67 = dma.hbm_to_vmem [thread:$0]  %s4, 1024, %s62, [#allocation9], 64, 64, 4
    $region21: #{tpu_custom_call.1} parent=1 // pred_fallthru
      _
    // Predicated region
    $region22: #{tpu_custom_call.1} parent=1 // pred_check
      _
    $region23: #{tpu_custom_call.1} parent=1 // pred_check_branch
      %69 = sbr.rel (0) target = $region25
    $region24: #{tpu_custom_call.1} parent=1 // pred_region
      %s71 = ssub.s32 1024, 1024
      %72 = vsyncadd [#allocation9], %s71
      %s73 = sshll.u32 [#allocation10], 4
      %s74 = int_to_ptr.vmem [resolvable:$true] %s73
      %79 = dma.hbm_to_vmem [thread:$0]  %s5, 1024, %s74, [#allocation9], 64, 64, 4
    $region25: #{tpu_custom_call.1} parent=1 // pred_fallthru
      _
    // Predicated region
    $region26: #{tpu_custom_call.1} parent=1 // pred_check
      _
    $region27: #{tpu_custom_call.1} parent=1 // pred_check_branch
      %81 = sbr.rel (0) target = $region29
    $region28: #{tpu_custom_call.1} parent=1 // pred_region
      _
    $region29: #{tpu_custom_call.1} parent=1 // pred_fallthru
      _
    // Predicated region
    $region30: #{tpu_custom_call.1} parent=1 // pred_check
      _
    $region31: #{tpu_custom_call.1} parent=1 // pred_check_branch
      %83 = sbr.rel (0) target = $region33
    $region32: #{tpu_custom_call.1} parent=1 // pred_region
      %s85 = ssub.s32 1024, 1024
      %86 = vsyncadd [#allocation12], %s85
      %s87 = sshll.u32 [#allocation11], 4
      %s88 = int_to_ptr.vmem [resolvable:$true] %s87
      %93 = dma.hbm_to_vmem [thread:$0]  %s7, 1024, %s88, [#allocation12], 64, 64, 4
    $region33: #{tpu_custom_call.1} parent=1 // pred_fallthru
      _
    // Predicated region
    $region34: #{tpu_custom_call.1} parent=1 // pred_check
      _
    $region35: #{tpu_custom_call.1} parent=1 // pred_check_branch
      %95 = sbr.rel (0) target = $region37
    $region36: #{tpu_custom_call.1} parent=1 // pred_region
      %s97 = ssub.s32 1024, 1024
      %98 = vsyncadd [#allocation12], %s97
      %s99 = sshll.u32 [#allocation13], 4
      %s100 = int_to_ptr.vmem [resolvable:$true] %s99
      %105 = dma.hbm_to_vmem [thread:$0]  %s8, 1024, %s100, [#allocation12], 64, 64, 4
    $region37: #{tpu_custom_call.1} parent=1 // pred_fallthru
      _
    // Predicated region
    $region38: #{tpu_custom_call.1} parent=1 // pred_check
      _
    $region39: #{tpu_custom_call.1} parent=1 // pred_check_branch
      %107 = sbr.rel (0) target = $region41
    $region40: #{tpu_custom_call.1} parent=1 // pred_region
      _
    $region41: #{tpu_custom_call.1} parent=1 // pred_fallthru
      _
    // Predicated region
    $region42: #{tpu_custom_call.1} parent=1 // pred_check
      _
    $region43: #{tpu_custom_call.1} parent=1 // pred_check_branch
      %109 = sbr.rel (0) target = $region45
    $region44: #{tpu_custom_call.1} parent=1 // pred_region
      %110 = dma.done [#allocation3], 64
    $region45: #{tpu_custom_call.1} parent=1 // pred_fallthru
      _
    // Predicated region
    $region46: #{tpu_custom_call.1} parent=1 // pred_check
      _
    $region47: #{tpu_custom_call.1} parent=1 // pred_check_branch
      %112 = sbr.rel (0) target = $region49
    $region48: #{tpu_custom_call.1} parent=1 // pred_region
      %113 = dma.done [#allocation6], 1024
    $region49: #{tpu_custom_call.1} parent=1 // pred_fallthru
      _
    // Predicated region
    $region50: #{tpu_custom_call.1} parent=1 // pred_check
      _
    $region51: #{tpu_custom_call.1} parent=1 // pred_check_branch
      %115 = sbr.rel (0) target = $region53
    $region52: #{tpu_custom_call.1} parent=1 // pred_region
      %116 = dma.done [#allocation6], 1024
    $region53: #{tpu_custom_call.1} parent=1 // pred_fallthru
      _
    // Predicated region
    $region54: #{tpu_custom_call.1} parent=1 // pred_check
      _
    $region55: #{tpu_custom_call.1} parent=1 // pred_check_branch
      %118 = sbr.rel (0) target = $region57
    $region56: #{tpu_custom_call.1} parent=1 // pred_region
      %119 = dma.done [#allocation9], 1024
    $region57: #{tpu_custom_call.1} parent=1 // pred_fallthru
      _
    // Predicated region
    $region58: #{tpu_custom_call.1} parent=1 // pred_check
      _
    $region59: #{tpu_custom_call.1} parent=1 // pred_check_branch
      %121 = sbr.rel (0) target = $region61
    $region60: #{tpu_custom_call.1} parent=1 // pred_region
      %122 = dma.done [#allocation9], 1024
    $region61: #{tpu_custom_call.1} parent=1 // pred_fallthru
      _
    // Predicated region
    $region62: #{tpu_custom_call.1} parent=1 // pred_check
      _
    $region63: #{tpu_custom_call.1} parent=1 // pred_check_branch
      %124 = sbr.rel (0) target = $region65
    $region64: #{tpu_custom_call.1} parent=1 // pred_region
      %125 = dma.done [#allocation12], 1024
    $region65: #{tpu_custom_call.1} parent=1 // pred_fallthru
      _
    // Predicated region
    $region66: #{tpu_custom_call.1} parent=1 // pred_check
      _
    $region67: #{tpu_custom_call.1} parent=1 // pred_check_branch
      %127 = sbr.rel (0) target = $region69
    $region68: #{tpu_custom_call.1} parent=1 // pred_region
      %128 = dma.done [#allocation12], 1024
    $region69: #{tpu_custom_call.1} parent=1 // pred_fallthru
      _
    %v130 = vld [vmem:[#allocation2] sm:$0xf]
    %v131 = vld [vmem:[%s3] sm:$0xf]
    %v132 = vld [vmem:[#allocation5] sm:$0xf]
    %v133 = vld [vmem:[#allocation5 + $0x4] sm:$0xf]
    %v134 = vld [vmem:[#allocation5 + $0x8] sm:$0xf]
    %v135 = vld [vmem:[#allocation5 + $0xc] sm:$0xf]
    %v136 = vld [vmem:[#allocation5 + $0x10] sm:$0xf]
    %v137 = vld [vmem:[#allocation5 + $0x14] sm:$0xf]
    %v138 = vld [vmem:[#allocation5 + $0x18] sm:$0xf]
    %v139 = vld [vmem:[#allocation5 + $0x1c] sm:$0xf]
    %v140 = vld [vmem:[#allocation5 + $0x20] sm:$0xf]
    %v141 = vld [vmem:[#allocation5 + $0x24] sm:$0xf]
    %v142 = vld [vmem:[#allocation5 + $0x28] sm:$0xf]
    %v143 = vld [vmem:[#allocation5 + $0x2c] sm:$0xf]
    %v144 = vld [vmem:[#allocation5 + $0x30] sm:$0xf]
    %v145 = vld [vmem:[#allocation5 + $0x34] sm:$0xf]
    %v146 = vld [vmem:[#allocation5 + $0x38] sm:$0xf]
    %v147 = vld [vmem:[#allocation5 + $0x3c] sm:$0xf]
    %v148 = vlaneseq
    %v149 = vshrl.u32 %v148, 7
    %v150 = vsub.s32 0, %v149
    %v151 = vrot.slane %v131, %v150
    %v168 = vunpack.c.l.b16 %v132
    %v169 = vunpack.c.l.b16 %v133
    %v170 = vunpack.c.l.b16 %v134
    %v171 = vunpack.c.l.b16 %v135
    %v172 = vunpack.c.l.b16 %v136
    %v173 = vunpack.c.l.b16 %v137
    %v174 = vunpack.c.l.b16 %v138
    %v175 = vunpack.c.l.b16 %v139
    %v176 = vunpack.c.l.b16 %v140
    %v177 = vunpack.c.l.b16 %v141
    %v178 = vunpack.c.l.b16 %v142
    %v179 = vunpack.c.l.b16 %v143
    %v180 = vunpack.c.l.b16 %v144
    %v181 = vunpack.c.l.b16 %v145
    %v182 = vunpack.c.l.b16 %v146
    %v183 = vunpack.c.l.b16 %v147
    %v184 = vpack.c.b16 %v169, %v168
    %v185 = vpack.c.b16 %v171, %v170
    %v186 = vpack.c.b16 %v173, %v172
    %v187 = vpack.c.b16 %v175, %v174
    %v188 = vpack.c.b16 %v177, %v176
    %v189 = vpack.c.b16 %v179, %v178
    %v190 = vpack.c.b16 %v181, %v180
    %v191 = vpack.c.b16 %v183, %v182
    %200 = vmatprep.subr.bf16.mxu0 0
    %201 = vmatpush1.bf16.msra.mxu0 %v191
    %202 = vmatprep.subr.bf16.mxu0 0
    %203 = vmatpush1.bf16.msra.mxu0 %v190
    %204 = vmatprep.subr.bf16.mxu0 0
    %205 = vmatpush1.bf16.msra.mxu0 %v189
    %206 = vmatprep.subr.bf16.mxu0 0
    %207 = vmatpush1.bf16.msra.mxu0 %v188
    %208 = vmatprep.subr.bf16.mxu0 0
    %209 = vmatpush1.bf16.msra.mxu0 %v187
    %210 = vmatprep.subr.bf16.mxu0 0
    %211 = vmatpush1.bf16.msra.mxu0 %v186
    %212 = vmatprep.subr.bf16.mxu0 0
    %213 = vmatpush1.bf16.msra.mxu0 %v185
    %214 = vmatprep.subr.bf16.mxu0 0
    %215 = vmatpush1.bf16.msra.mxu0 %v184
    %216 = vmatprep.subr.bf16.mxu0 0
    %217 = vmatpush2.bf16.msra.mxu0 0
    %218 = vmatprep.subr.bf16.mxu0 0
    %219 = vmatpush2.bf16.msra.mxu0 0
    %220 = vmatprep.subr.bf16.mxu0 0
    %221 = vmatpush2.bf16.msra.mxu0 0
    %222 = vmatprep.subr.bf16.mxu0 0
    %223 = vmatpush2.bf16.msra.mxu0 0
    %224 = vmatprep.subr.bf16.mxu0 0
    %225 = vmatpush2.bf16.msra.mxu0 0
    %226 = vmatprep.subr.bf16.mxu0 0
    %227 = vmatpush2.bf16.msra.mxu0 0
    %228 = vmatprep.subr.bf16.mxu0 0
    %229 = vmatpush2.bf16.msra.mxu0 0
    %230 = vmatprep.subr.bf16.mxu0 0
    %231 = vmatpush2.bf16.msra.mxu0 0
    %232 = vmatprep.mubr.bf16.mxu0 0
    %233 = vmatmul.mubr.bf16.gmra.mxu0 %v130
    %v234 = vpop.f32.mrf.mxu0
    %v235 = vadd.f32 %v151, %v234
    %v236 = vpop.f32.mrf.mxu0
    %v237 = vpop.f32.mrf.mxu0
    %v238 = vpop.f32.mrf.mxu0
    %239 = vdwg.mxu0
    %v240 = vmul.f32 %v235, -1.702
    %v241 = vmul.f32 %v240, 1.442695
    %v242 = vpow.pop %v241
    %v243 = vadd.f32 %v242, 1.0
    %v244 = vrcp.pop %v243
    %v245 = vmul.f32 %v235, %v244
    %v246 = vpack.c.bf16 %v245, %v245
    %v247 = vld [vmem:[#allocation7] sm:$0xf]
    %v248 = vld [vmem:[#allocation7 + $0x4] sm:$0xf]
    %v249 = vld [vmem:[#allocation7 + $0x8] sm:$0xf]
    %v250 = vld [vmem:[#allocation7 + $0xc] sm:$0xf]
    %v251 = vld [vmem:[#allocation7 + $0x10] sm:$0xf]
    %v252 = vld [vmem:[#allocation7 + $0x14] sm:$0xf]
    %v253 = vld [vmem:[#allocation7 + $0x18] sm:$0xf]
    %v254 = vld [vmem:[#allocation7 + $0x1c] sm:$0xf]
    %v255 = vld [vmem:[#allocation7 + $0x20] sm:$0xf]
    %v256 = vld [vmem:[#allocation7 + $0x24] sm:$0xf]
    %v257 = vld [vmem:[#allocation7 + $0x28] sm:$0xf]
    %v258 = vld [vmem:[#allocation7 + $0x2c] sm:$0xf]
    %v259 = vld [vmem:[#allocation7 + $0x30] sm:$0xf]
    %v260 = vld [vmem:[#allocation7 + $0x34] sm:$0xf]
    %v261 = vld [vmem:[#allocation7 + $0x38] sm:$0xf]
    %v262 = vld [vmem:[#allocation7 + $0x3c] sm:$0xf]
    %v263 = vlaneseq
    %v264 = vshrl.u32 %v263, 7
    %v265 = vsub.s32 1, %v264
    %v266 = vrot.slane %v131, %v265
    %v283 = vunpack.c.l.b16 %v247
    %v284 = vunpack.c.l.b16 %v248
    %v285 = vunpack.c.l.b16 %v249
    %v286 = vunpack.c.l.b16 %v250
    %v287 = vunpack.c.l.b16 %v251
    %v288 = vunpack.c.l.b16 %v252
    %v289 = vunpack.c.l.b16 %v253
    %v290 = vunpack.c.l.b16 %v254
    %v291 = vunpack.c.l.b16 %v255
    %v292 = vunpack.c.l.b16 %v256
    %v293 = vunpack.c.l.b16 %v257
    %v294 = vunpack.c.l.b16 %v258
    %v295 = vunpack.c.l.b16 %v259
    %v296 = vunpack.c.l.b16 %v260
    %v297 = vunpack.c.l.b16 %v261
    %v298 = vunpack.c.l.b16 %v262
    %v299 = vpack.c.b16 %v284, %v283
    %v300 = vpack.c.b16 %v286, %v285
    %v301 = vpack.c.b16 %v288, %v287
    %v302 = vpack.c.b16 %v290, %v289
    %v303 = vpack.c.b16 %v292, %v291
    %v304 = vpack.c.b16 %v294, %v293
    %v305 = vpack.c.b16 %v296, %v295
    %v306 = vpack.c.b16 %v298, %v297
    %315 = vmatprep.subr.bf16.mxu0 0
    %316 = vmatpush1.bf16.msra.mxu0 %v306
    %317 = vmatprep.subr.bf16.mxu0 0
    %318 = vmatpush1.bf16.msra.mxu0 %v305
    %319 = vmatprep.subr.bf16.mxu0 0
    %320 = vmatpush1.bf16.msra.mxu0 %v304
    %321 = vmatprep.subr.bf16.mxu0 0
    %322 = vmatpush1.bf16.msra.mxu0 %v303
    %323 = vmatprep.subr.bf16.mxu0 0
    %324 = vmatpush1.bf16.msra.mxu0 %v302
    %325 = vmatprep.subr.bf16.mxu0 0
    %326 = vmatpush1.bf16.msra.mxu0 %v301
    %327 = vmatprep.subr.bf16.mxu0 0
    %328 = vmatpush1.bf16.msra.mxu0 %v300
    %329 = vmatprep.subr.bf16.mxu0 0
    %330 = vmatpush1.bf16.msra.mxu0 %v299
    %331 = vmatprep.subr.bf16.mxu0 0
    %332 = vmatpush2.bf16.msra.mxu0 0
    %333 = vmatprep.subr.bf16.mxu0 0
    %334 = vmatpush2.bf16.msra.mxu0 0
    %335 = vmatprep.subr.bf16.mxu0 0
    %336 = vmatpush2.bf16.msra.mxu0 0
    %337 = vmatprep.subr.bf16.mxu0 0
    %338 = vmatpush2.bf16.msra.mxu0 0
    %339 = vmatprep.subr.bf16.mxu0 0
    %340 = vmatpush2.bf16.msra.mxu0 0
    %341 = vmatprep.subr.bf16.mxu0 0
    %342 = vmatpush2.bf16.msra.mxu0 0
    %343 = vmatprep.subr.bf16.mxu0 0
    %344 = vmatpush2.bf16.msra.mxu0 0
    %345 = vmatprep.subr.bf16.mxu0 0
    %346 = vmatpush2.bf16.msra.mxu0 0
    %347 = vmatprep.mubr.bf16.mxu0 0
    %348 = vmatmul.mubr.bf16.gmra.mxu0 %v246
    %v349 = vpop.f32.mrf.mxu0
    %v350 = vadd.f32 %v266, %v349
    %v351 = vpop.f32.mrf.mxu0
    %v352 = vpop.f32.mrf.mxu0
    %v353 = vpop.f32.mrf.mxu0
    %354 = vdwg.mxu0
    %v355 = vadd.f32 %v235, %v350
    %356 = vadd.xlane.f32.xlu0 %v355
    %v357 = vpop.xlane.xlu0 %356
    %v358 = vmul.f32 %v357, 0.03125
    %v359 = vmul.f32 %v355, %v355
    %360 = vadd.xlane.f32.xlu0 %v359
    %v361 = vpop.xlane.xlu0 %360
    %v362 = vmul.f32 %v361, 0.03125
    %v363 = vmul.f32 %v358, %v358
    %v364 = vsub.f32 %v362, %v363
    %v365 = vsub.f32 %v355, %v358
    %v366 = vadd.f32 %v364, 1e-05
    %v367 = vrsqrt.pop %v366
    %v368 = vmul.f32 %v365, %v367
    %v369 = vlaneseq
    %v370 = vshrl.u32 %v369, 7
    %v371 = vsub.s32 2, %v370
    %v372 = vrot.slane %v131, %v371
    %v373 = vmul.f32 %v368, %v372
    %v374 = vlaneseq
    %v375 = vshrl.u32 %v374, 7
    %v376 = vsub.s32 3, %v375
    %v377 = vrot.slane %v131, %v376
    %v378 = vadd.f32 %v373, %v377
    %v379 = vld [vmem:[%s6] sm:$0xf]
    %v380 = vpack.c.bf16 %v378, %v378
    %v381 = vld [vmem:[#allocation8] sm:$0xf]
    %v382 = vld [vmem:[#allocation8 + $0x4] sm:$0xf]
    %v383 = vld [vmem:[#allocation8 + $0x8] sm:$0xf]
    %v384 = vld [vmem:[#allocation8 + $0xc] sm:$0xf]
    %v385 = vld [vmem:[#allocation8 + $0x10] sm:$0xf]
    %v386 = vld [vmem:[#allocation8 + $0x14] sm:$0xf]
    %v387 = vld [vmem:[#allocation8 + $0x18] sm:$0xf]
    %v388 = vld [vmem:[#allocation8 + $0x1c] sm:$0xf]
    %v389 = vld [vmem:[#allocation8 + $0x20] sm:$0xf]
    %v390 = vld [vmem:[#allocation8 + $0x24] sm:$0xf]
    %v391 = vld [vmem:[#allocation8 + $0x28] sm:$0xf]
    %v392 = vld [vmem:[#allocation8 + $0x2c] sm:$0xf]
    %v393 = vld [vmem:[#allocation8 + $0x30] sm:$0xf]
    %v394 = vld [vmem:[#allocation8 + $0x34] sm:$0xf]
    %v395 = vld [vmem:[#allocation8 + $0x38] sm:$0xf]
    %v396 = vld [vmem:[#allocation8 + $0x3c] sm:$0xf]
    %v397 = vlaneseq
    %v398 = vshrl.u32 %v397, 7
    %v399 = vsub.s32 0, %v398
    %v400 = vrot.slane %v379, %v399
    %v417 = vunpack.c.l.b16 %v381
    %v418 = vunpack.c.l.b16 %v382
    %v419 = vunpack.c.l.b16 %v383
    %v420 = vunpack.c.l.b16 %v384
    %v421 = vunpack.c.l.b16 %v385
    %v422 = vunpack.c.l.b16 %v386
    %v423 = vunpack.c.l.b16 %v387
    %v424 = vunpack.c.l.b16 %v388
    %v425 = vunpack.c.l.b16 %v389
    %v426 = vunpack.c.l.b16 %v390
    %v427 = vunpack.c.l.b16 %v391
    %v428 = vunpack.c.l.b16 %v392
    %v429 = vunpack.c.l.b16 %v393
    %v430 = vunpack.c.l.b16 %v394
    %v431 = vunpack.c.l.b16 %v395
    %v432 = vunpack.c.l.b16 %v396
    %v433 = vpack.c.b16 %v418, %v417
    %v434 = vpack.c.b16 %v420, %v419
    %v435 = vpack.c.b16 %v422, %v421
    %v436 = vpack.c.b16 %v424, %v423
    %v437 = vpack.c.b16 %v426, %v425
    %v438 = vpack.c.b16 %v428, %v427
    %v439 = vpack.c.b16 %v430, %v429
    %v440 = vpack.c.b16 %v432, %v431
    %449 = vmatprep.subr.bf16.mxu0 0
    %450 = vmatpush1.bf16.msra.mxu0 %v440
    %451 = vmatprep.subr.bf16.mxu0 0
    %452 = vmatpush1.bf16.msra.mxu0 %v439
    %453 = vmatprep.subr.bf16.mxu0 0
    %454 = vmatpush1.bf16.msra.mxu0 %v438
    %455 = vmatprep.subr.bf16.mxu0 0
    %456 = vmatpush1.bf16.msra.mxu0 %v437
    %457 = vmatprep.subr.bf16.mxu0 0
    %458 = vmatpush1.bf16.msra.mxu0 %v436
    %459 = vmatprep.subr.bf16.mxu0 0
    %460 = vmatpush1.bf16.msra.mxu0 %v435
    %461 = vmatprep.subr.bf16.mxu0 0
    %462 = vmatpush1.bf16.msra.mxu0 %v434
    %463 = vmatprep.subr.bf16.mxu0 0
    %464 = vmatpush1.bf16.msra.mxu0 %v433
    %465 = vmatprep.subr.bf16.mxu0 0
    %466 = vmatpush2.bf16.msra.mxu0 0
    %467 = vmatprep.subr.bf16.mxu0 0
    %468 = vmatpush2.bf16.msra.mxu0 0
    %469 = vmatprep.subr.bf16.mxu0 0
    %470 = vmatpush2.bf16.msra.mxu0 0
    %471 = vmatprep.subr.bf16.mxu0 0
    %472 = vmatpush2.bf16.msra.mxu0 0
    %473 = vmatprep.subr.bf16.mxu0 0
    %474 = vmatpush2.bf16.msra.mxu0 0
    %475 = vmatprep.subr.bf16.mxu0 0
    %476 = vmatpush2.bf16.msra.mxu0 0
    %477 = vmatprep.subr.bf16.mxu0 0
    %478 = vmatpush2.bf16.msra.mxu0 0
    %479 = vmatprep.subr.bf16.mxu0 0
    %480 = vmatpush2.bf16.msra.mxu0 0
    %481 = vmatprep.mubr.bf16.mxu0 0
    %482 = vmatmul.mubr.bf16.gmra.mxu0 %v380
    %v483 = vpop.f32.mrf.mxu0
    %v484 = vadd.f32 %v400, %v483
    %v485 = vpop.f32.mrf.mxu0
    %v486 = vpop.f32.mrf.mxu0
    %v487 = vpop.f32.mrf.mxu0
    %488 = vdwg.mxu0
    %v489 = vmul.f32 %v484, -1.702
    %v490 = vmul.f32 %v489, 1.442695
    %v491 = vpow.pop %v490
    %v492 = vadd.f32 %v491, 1.0
    %v493 = vrcp.pop %v492
    %v494 = vmul.f32 %v484, %v493
    %v495 = vpack.c.bf16 %v494, %v494
    %v496 = vld [vmem:[#allocation10] sm:$0xf]
    %v497 = vld [vmem:[#allocation10 + $0x4] sm:$0xf]
    %v498 = vld [vmem:[#allocation10 + $0x8] sm:$0xf]
    %v499 = vld [vmem:[#allocation10 + $0xc] sm:$0xf]
    %v500 = vld [vmem:[#allocation10 + $0x10] sm:$0xf]
    %v501 = vld [vmem:[#allocation10 + $0x14] sm:$0xf]
    %v502 = vld [vmem:[#allocation10 + $0x18] sm:$0xf]
    %v503 = vld [vmem:[#allocation10 + $0x1c] sm:$0xf]
    %v504 = vld [vmem:[#allocation10 + $0x20] sm:$0xf]
    %v505 = vld [vmem:[#allocation10 + $0x24] sm:$0xf]
    %v506 = vld [vmem:[#allocation10 + $0x28] sm:$0xf]
    %v507 = vld [vmem:[#allocation10 + $0x2c] sm:$0xf]
    %v508 = vld [vmem:[#allocation10 + $0x30] sm:$0xf]
    %v509 = vld [vmem:[#allocation10 + $0x34] sm:$0xf]
    %v510 = vld [vmem:[#allocation10 + $0x38] sm:$0xf]
    %v511 = vld [vmem:[#allocation10 + $0x3c] sm:$0xf]
    %v512 = vlaneseq
    %v513 = vshrl.u32 %v512, 7
    %v514 = vsub.s32 1, %v513
    %v515 = vrot.slane %v379, %v514
    %v532 = vunpack.c.l.b16 %v496
    %v533 = vunpack.c.l.b16 %v497
    %v534 = vunpack.c.l.b16 %v498
    %v535 = vunpack.c.l.b16 %v499
    %v536 = vunpack.c.l.b16 %v500
    %v537 = vunpack.c.l.b16 %v501
    %v538 = vunpack.c.l.b16 %v502
    %v539 = vunpack.c.l.b16 %v503
    %v540 = vunpack.c.l.b16 %v504
    %v541 = vunpack.c.l.b16 %v505
    %v542 = vunpack.c.l.b16 %v506
    %v543 = vunpack.c.l.b16 %v507
    %v544 = vunpack.c.l.b16 %v508
    %v545 = vunpack.c.l.b16 %v509
    %v546 = vunpack.c.l.b16 %v510
    %v547 = vunpack.c.l.b16 %v511
    %v548 = vpack.c.b16 %v533, %v532
    %v549 = vpack.c.b16 %v535, %v534
    %v550 = vpack.c.b16 %v537, %v536
    %v551 = vpack.c.b16 %v539, %v538
    %v552 = vpack.c.b16 %v541, %v540
    %v553 = vpack.c.b16 %v543, %v542
    %v554 = vpack.c.b16 %v545, %v544
    %v555 = vpack.c.b16 %v547, %v546
    %564 = vmatprep.subr.bf16.mxu0 0
    %565 = vmatpush1.bf16.msra.mxu0 %v555
    %566 = vmatprep.subr.bf16.mxu0 0
    %567 = vmatpush1.bf16.msra.mxu0 %v554
    %568 = vmatprep.subr.bf16.mxu0 0
    %569 = vmatpush1.bf16.msra.mxu0 %v553
    %570 = vmatprep.subr.bf16.mxu0 0
    %571 = vmatpush1.bf16.msra.mxu0 %v552
    %572 = vmatprep.subr.bf16.mxu0 0
    %573 = vmatpush1.bf16.msra.mxu0 %v551
    %574 = vmatprep.subr.bf16.mxu0 0
    %575 = vmatpush1.bf16.msra.mxu0 %v550
    %576 = vmatprep.subr.bf16.mxu0 0
    %577 = vmatpush1.bf16.msra.mxu0 %v549
    %578 = vmatprep.subr.bf16.mxu0 0
    %579 = vmatpush1.bf16.msra.mxu0 %v548
    %580 = vmatprep.subr.bf16.mxu0 0
    %581 = vmatpush2.bf16.msra.mxu0 0
    %582 = vmatprep.subr.bf16.mxu0 0
    %583 = vmatpush2.bf16.msra.mxu0 0
    %584 = vmatprep.subr.bf16.mxu0 0
    %585 = vmatpush2.bf16.msra.mxu0 0
    %586 = vmatprep.subr.bf16.mxu0 0
    %587 = vmatpush2.bf16.msra.mxu0 0
    %588 = vmatprep.subr.bf16.mxu0 0
    %589 = vmatpush2.bf16.msra.mxu0 0
    %590 = vmatprep.subr.bf16.mxu0 0
    %591 = vmatpush2.bf16.msra.mxu0 0
    %592 = vmatprep.subr.bf16.mxu0 0
    %593 = vmatpush2.bf16.msra.mxu0 0
    %594 = vmatprep.subr.bf16.mxu0 0
    %595 = vmatpush2.bf16.msra.mxu0 0
    %596 = vmatprep.mubr.bf16.mxu0 0
    %597 = vmatmul.mubr.bf16.gmra.mxu0 %v495
    %v598 = vpop.f32.mrf.mxu0
    %v599 = vadd.f32 %v515, %v598
    %v600 = vpop.f32.mrf.mxu0
    %v601 = vpop.f32.mrf.mxu0
    %v602 = vpop.f32.mrf.mxu0
    %603 = vdwg.mxu0
    %v604 = vadd.f32 %v484, %v599
    %605 = vadd.xlane.f32.xlu0 %v604
    %v606 = vpop.xlane.xlu0 %605
    %v607 = vmul.f32 %v606, 0.03125
    %v608 = vmul.f32 %v604, %v604
    %609 = vadd.xlane.f32.xlu0 %v608
    %v610 = vpop.xlane.xlu0 %609
    %v611 = vmul.f32 %v610, 0.03125
    %v612 = vmul.f32 %v607, %v607
    %v613 = vsub.f32 %v611, %v612
    %v614 = vsub.f32 %v604, %v607
    %v615 = vadd.f32 %v613, 1e-05
    %v616 = vrsqrt.pop %v615
    %v617 = vmul.f32 %v614, %v616
    %v618 = vlaneseq
    %v619 = vshrl.u32 %v618, 7
    %v620 = vsub.s32 2, %v619
    %v621 = vrot.slane %v379, %v620
    %v622 = vmul.f32 %v617, %v621
    %v623 = vlaneseq
    %v624 = vshrl.u32 %v623, 7
    %v625 = vsub.s32 3, %v624
    %v626 = vrot.slane %v379, %v625
    %v627 = vadd.f32 %v622, %v626
    %v628 = vld [vmem:[%s9] sm:$0xf]
    %v629 = vpack.c.bf16 %v627, %v627
    %v630 = vld [vmem:[#allocation11] sm:$0xf]
    %v631 = vld [vmem:[#allocation11 + $0x4] sm:$0xf]
    %v632 = vld [vmem:[#allocation11 + $0x8] sm:$0xf]
    %v633 = vld [vmem:[#allocation11 + $0xc] sm:$0xf]
    %v634 = vld [vmem:[#allocation11 + $0x10] sm:$0xf]
    %v635 = vld [vmem:[#allocation11 + $0x14] sm:$0xf]
    %v636 = vld [vmem:[#allocation11 + $0x18] sm:$0xf]
    %v637 = vld [vmem:[#allocation11 + $0x1c] sm:$0xf]
    %v638 = vld [vmem:[#allocation11 + $0x20] sm:$0xf]
    %v639 = vld [vmem:[#allocation11 + $0x24] sm:$0xf]
    %v640 = vld [vmem:[#allocation11 + $0x28] sm:$0xf]
    %v641 = vld [vmem:[#allocation11 + $0x2c] sm:$0xf]
    %v642 = vld [vmem:[#allocation11 + $0x30] sm:$0xf]
    %v643 = vld [vmem:[#allocation11 + $0x34] sm:$0xf]
    %v644 = vld [vmem:[#allocation11 + $0x38] sm:$0xf]
    %v645 = vld [vmem:[#allocation11 + $0x3c] sm:$0xf]
    %v646 = vlaneseq
    %v647 = vshrl.u32 %v646, 7
    %v648 = vsub.s32 0, %v647
    %v649 = vrot.slane %v628, %v648
    %v666 = vunpack.c.l.b16 %v630
    %v667 = vunpack.c.l.b16 %v631
    %v668 = vunpack.c.l.b16 %v632
    %v669 = vunpack.c.l.b16 %v633
    %v670 = vunpack.c.l.b16 %v634
    %v671 = vunpack.c.l.b16 %v635
    %v672 = vunpack.c.l.b16 %v636
    %v673 = vunpack.c.l.b16 %v637
    %v674 = vunpack.c.l.b16 %v638
    %v675 = vunpack.c.l.b16 %v639
    %v676 = vunpack.c.l.b16 %v640
    %v677 = vunpack.c.l.b16 %v641
    %v678 = vunpack.c.l.b16 %v642
    %v679 = vunpack.c.l.b16 %v643
    %v680 = vunpack.c.l.b16 %v644
    %v681 = vunpack.c.l.b16 %v645
    %v682 = vpack.c.b16 %v667, %v666
    %v683 = vpack.c.b16 %v669, %v668
    %v684 = vpack.c.b16 %v671, %v670
    %v685 = vpack.c.b16 %v673, %v672
    %v686 = vpack.c.b16 %v675, %v674
    %v687 = vpack.c.b16 %v677, %v676
    %v688 = vpack.c.b16 %v679, %v678
    %v689 = vpack.c.b16 %v681, %v680
    %698 = vmatprep.subr.bf16.mxu0 0
    %699 = vmatpush1.bf16.msra.mxu0 %v689
    %700 = vmatprep.subr.bf16.mxu0 0
    %701 = vmatpush1.bf16.msra.mxu0 %v688
    %702 = vmatprep.subr.bf16.mxu0 0
    %703 = vmatpush1.bf16.msra.mxu0 %v687
    %704 = vmatprep.subr.bf16.mxu0 0
    %705 = vmatpush1.bf16.msra.mxu0 %v686
    %706 = vmatprep.subr.bf16.mxu0 0
    %707 = vmatpush1.bf16.msra.mxu0 %v685
    %708 = vmatprep.subr.bf16.mxu0 0
    %709 = vmatpush1.bf16.msra.mxu0 %v684
    %710 = vmatprep.subr.bf16.mxu0 0
    %711 = vmatpush1.bf16.msra.mxu0 %v683
    %712 = vmatprep.subr.bf16.mxu0 0
    %713 = vmatpush1.bf16.msra.mxu0 %v682
    %714 = vmatprep.subr.bf16.mxu0 0
    %715 = vmatpush2.bf16.msra.mxu0 0
    %716 = vmatprep.subr.bf16.mxu0 0
    %717 = vmatpush2.bf16.msra.mxu0 0
    %718 = vmatprep.subr.bf16.mxu0 0
    %719 = vmatpush2.bf16.msra.mxu0 0
    %720 = vmatprep.subr.bf16.mxu0 0
    %721 = vmatpush2.bf16.msra.mxu0 0
    %722 = vmatprep.subr.bf16.mxu0 0
    %723 = vmatpush2.bf16.msra.mxu0 0
    %724 = vmatprep.subr.bf16.mxu0 0
    %725 = vmatpush2.bf16.msra.mxu0 0
    %726 = vmatprep.subr.bf16.mxu0 0
    %727 = vmatpush2.bf16.msra.mxu0 0
    %728 = vmatprep.subr.bf16.mxu0 0
    %729 = vmatpush2.bf16.msra.mxu0 0
    %730 = vmatprep.mubr.bf16.mxu0 0
    %731 = vmatmul.mubr.bf16.gmra.mxu0 %v629
    %v732 = vpop.f32.mrf.mxu0
    %v733 = vadd.f32 %v649, %v732
    %v734 = vpop.f32.mrf.mxu0
    %v735 = vpop.f32.mrf.mxu0
    %v736 = vpop.f32.mrf.mxu0
    %737 = vdwg.mxu0
    %v738 = vmul.f32 %v733, -1.702
    %v739 = vmul.f32 %v738, 1.442695
    %v740 = vpow.pop %v739
    %v741 = vadd.f32 %v740, 1.0
    %v742 = vrcp.pop %v741
    %v743 = vmul.f32 %v733, %v742
    %v744 = vpack.c.bf16 %v743, %v743
    %v745 = vld [vmem:[#allocation13] sm:$0xf]
    %v746 = vld [vmem:[#allocation13 + $0x4] sm:$0xf]
    %v747 = vld [vmem:[#allocation13 + $0x8] sm:$0xf]
    %v748 = vld [vmem:[#allocation13 + $0xc] sm:$0xf]
    %v749 = vld [vmem:[#allocation13 + $0x10] sm:$0xf]
    %v750 = vld [vmem:[#allocation13 + $0x14] sm:$0xf]
    %v751 = vld [vmem:[#allocation13 + $0x18] sm:$0xf]
    %v752 = vld [vmem:[#allocation13 + $0x1c] sm:$0xf]
    %v753 = vld [vmem:[#allocation13 + $0x20] sm:$0xf]
    %v754 = vld [vmem:[#allocation13 + $0x24] sm:$0xf]
    %v755 = vld [vmem:[#allocation13 + $0x28] sm:$0xf]
    %v756 = vld [vmem:[#allocation13 + $0x2c] sm:$0xf]
    %v757 = vld [vmem:[#allocation13 + $0x30] sm:$0xf]
    %v758 = vld [vmem:[#allocation13 + $0x34] sm:$0xf]
    %v759 = vld [vmem:[#allocation13 + $0x38] sm:$0xf]
    %v760 = vld [vmem:[#allocation13 + $0x3c] sm:$0xf]
    %v761 = vlaneseq
    %v762 = vshrl.u32 %v761, 7
    %v763 = vsub.s32 1, %v762
    %v764 = vrot.slane %v628, %v763
    %v781 = vunpack.c.l.b16 %v745
    %v782 = vunpack.c.l.b16 %v746
    %v783 = vunpack.c.l.b16 %v747
    %v784 = vunpack.c.l.b16 %v748
    %v785 = vunpack.c.l.b16 %v749
    %v786 = vunpack.c.l.b16 %v750
    %v787 = vunpack.c.l.b16 %v751
    %v788 = vunpack.c.l.b16 %v752
    %v789 = vunpack.c.l.b16 %v753
    %v790 = vunpack.c.l.b16 %v754
    %v791 = vunpack.c.l.b16 %v755
    %v792 = vunpack.c.l.b16 %v756
    %v793 = vunpack.c.l.b16 %v757
    %v794 = vunpack.c.l.b16 %v758
    %v795 = vunpack.c.l.b16 %v759
    %v796 = vunpack.c.l.b16 %v760
    %v797 = vpack.c.b16 %v782, %v781
    %v798 = vpack.c.b16 %v784, %v783
    %v799 = vpack.c.b16 %v786, %v785
    %v800 = vpack.c.b16 %v788, %v787
    %v801 = vpack.c.b16 %v790, %v789
    %v802 = vpack.c.b16 %v792, %v791
    %v803 = vpack.c.b16 %v794, %v793
    %v804 = vpack.c.b16 %v796, %v795
    %813 = vmatprep.subr.bf16.mxu0 0
    %814 = vmatpush1.bf16.msra.mxu0 %v804
    %815 = vmatprep.subr.bf16.mxu0 0
    %816 = vmatpush1.bf16.msra.mxu0 %v803
    %817 = vmatprep.subr.bf16.mxu0 0
    %818 = vmatpush1.bf16.msra.mxu0 %v802
    %819 = vmatprep.subr.bf16.mxu0 0
    %820 = vmatpush1.bf16.msra.mxu0 %v801
    %821 = vmatprep.subr.bf16.mxu0 0
    %822 = vmatpush1.bf16.msra.mxu0 %v800
    %823 = vmatprep.subr.bf16.mxu0 0
    %824 = vmatpush1.bf16.msra.mxu0 %v799
    %825 = vmatprep.subr.bf16.mxu0 0
    %826 = vmatpush1.bf16.msra.mxu0 %v798
    %827 = vmatprep.subr.bf16.mxu0 0
    %828 = vmatpush1.bf16.msra.mxu0 %v797
    %829 = vmatprep.subr.bf16.mxu0 0
    %830 = vmatpush2.bf16.msra.mxu0 0
    %831 = vmatprep.subr.bf16.mxu0 0
    %832 = vmatpush2.bf16.msra.mxu0 0
    %833 = vmatprep.subr.bf16.mxu0 0
    %834 = vmatpush2.bf16.msra.mxu0 0
    %835 = vmatprep.subr.bf16.mxu0 0
    %836 = vmatpush2.bf16.msra.mxu0 0
    %837 = vmatprep.subr.bf16.mxu0 0
    %838 = vmatpush2.bf16.msra.mxu0 0
    %839 = vmatprep.subr.bf16.mxu0 0
    %840 = vmatpush2.bf16.msra.mxu0 0
    %841 = vmatprep.subr.bf16.mxu0 0
    %842 = vmatpush2.bf16.msra.mxu0 0
    %843 = vmatprep.subr.bf16.mxu0 0
    %844 = vmatpush2.bf16.msra.mxu0 0
    %845 = vmatprep.mubr.bf16.mxu0 0
    %846 = vmatmul.mubr.bf16.gmra.mxu0 %v744
    %v847 = vpop.f32.mrf.mxu0
    %v848 = vadd.f32 %v764, %v847
    %v849 = vpop.f32.mrf.mxu0
    %v850 = vpop.f32.mrf.mxu0
    %v851 = vpop.f32.mrf.mxu0
    %852 = vdwg.mxu0
    %v853 = vadd.f32 %v733, %v848
    %854 = vadd.xlane.f32.xlu0 %v853
    %v855 = vpop.xlane.xlu0 %854
    %v856 = vmul.f32 %v855, 0.0625
    %v857 = vmul.f32 %v853, %v853
    %858 = vadd.xlane.f32.xlu0 %v857
    %v859 = vpop.xlane.xlu0 %858
    %v860 = vmul.f32 %v859, 0.0625
    %v861 = vmul.f32 %v856, %v856
    %v862 = vsub.f32 %v860, %v861
    %v863 = vsub.f32 %v853, %v856
    %v864 = vadd.f32 %v862, 1e-05
    %v865 = vrsqrt.pop %v864
    %v866 = vmul.f32 %v863, %v865
    %v867 = vlaneseq
    %v868 = vshrl.u32 %v867, 7
    %v869 = vsub.s32 2, %v868
    %v870 = vrot.slane %v628, %v869
    %v871 = vmul.f32 %v866, %v870
    %v872 = vlaneseq
    %v873 = vshrl.u32 %v872, 7
    %v874 = vsub.s32 3, %v873
    %v875 = vrot.slane %v628, %v874
    %v876 = vadd.f32 %v871, %v875
    %v877 = vlaneseq
    %v878 = vand.u32 %v877, 127
    %vm879 = vcmp.lt.s32.totalorder %v878, 16
    %v880 = vsel %vm879, %v876, -1e+30
    %881 = vmax.xlane.f32.xlu0 %v880
    %v882 = vpop.xlane.xlu0 %881
    %v883 = vsub.f32 %v880, %v882
    %v884 = vmul.f32 %v883, 1.442695
    %v885 = vpow.pop %v884
    %886 = vadd.xlane.f32.xlu0 %v885
    %v887 = vpop.xlane.xlu0 %886
    %v888 = vlog2.pop %v887
    %v889 = vmul.f32 %v888, 0.6931472
    %v890 = vsub.f32 %v883, %v889
    %891 = vst [vmem:[#allocation14] sm:$0xff] %v890
    // Predicated region
    $region70: #{tpu_custom_call.1} parent=1 // pred_check
      _
    $region71: #{tpu_custom_call.1} parent=1 // pred_check_branch
      %893 = sbr.rel (0) target = $region73
    $region72: #{tpu_custom_call.1} parent=1 // pred_region
      %s895 = ssub.s32 128, 128
      %896 = vsyncadd [#allocation4], %s895
      %s898 = sshll.u32 [#allocation14], 4
      %s899 = int_to_ptr.vmem [resolvable:$true] %s898
      %901 = dma.vmem_to_hbm [thread:$0]  %s899, 128, %s10, [#allocation4]
    $region73: #{tpu_custom_call.1} parent=1 // pred_fallthru
      _
    // Predicated region
    $region74: #{tpu_custom_call.1} parent=1 // pred_check
      _
    $region75: #{tpu_custom_call.1} parent=1 // pred_check_branch
      %903 = sbr.rel (0) target = $region77
    $region76: #{tpu_custom_call.1} parent=1 // pred_region
      %904 = dma.done [#allocation4], 128
    $region77: #{tpu_custom_call.1} parent=1 // pred_fallthru
      _
    %905 = vsyncpa [#allocation3], 1
    %906 = vsyncpa [#allocation6], 1
    %907 = vsyncpa [#allocation9], 1
    %908 = vsyncpa [#allocation12], 1
    %909 = vsyncpa [#allocation4], 1

// kernel: tpu_custom_call.1
$region0: #{tpu_custom_call.1}
  #allocation0 [shape = 'u32[]', space=smem, size = 0x4, offset = 0x4, fixed_abs, tag = 'smem constant byte address 0x4 - core index']
  #allocation1 [shape = 'u32[144,128]{1,0:T(1,128)}', space=vmem, size = 0x12000, scoped, tag = 'internal scratch']
  %s0 = inlined_call_operand.hbm [shape: bf16[8,128], index: 0, kind: input, shape index: {}]
  %s1 = inlined_call_operand.hbm [shape: bf16[128,128], index: 1, kind: input, shape index: {}]
  %s2 = inlined_call_operand.hbm [shape: bf16[128,128], index: 2, kind: input, shape index: {}]
  %s3 = inlined_call_operand.vmem [shape: f32[4,128], index: 3, kind: input, shape index: {}]
  %s4 = inlined_call_operand.hbm [shape: bf16[128,128], index: 4, kind: input, shape index: {}]
  %s5 = inlined_call_operand.hbm [shape: bf16[128,128], index: 5, kind: input, shape index: {}]
  %s6 = inlined_call_operand.vmem [shape: f32[4,128], index: 6, kind: input, shape index: {}]
  %s7 = inlined_call_operand.hbm [shape: bf16[128,128], index: 7, kind: input, shape index: {}]
  %s8 = inlined_call_operand.hbm [shape: bf16[128,128], index: 8, kind: input, shape index: {}]
  %s9 = inlined_call_operand.vmem [shape: f32[4,128], index: 9, kind: input, shape index: {}]
  %s10 = inlined_call_operand.hbm [shape: f32[8,128], index: 10, kind: output, shape index: {}]
  %s11 = sld [smem:[#allocation0]]
  $region78: #{tpu_custom_call.1} parent=0
    _
  %s13 = ssub.s32 1, %s11
  %s14 = scalar_select 0, %s13, %s11
  $region1: #{tpu_custom_call.1} parent=0
    #allocation2 [shape = 'u8[2048]{0}', space=vmem, size = 0x800, scoped, tag = 'input window, operand 0, single buffered']
    #allocation3 [shape = 's32[1]{0}', space=sflag, size = 0x4, scoped, tag = 'scoped memory for tpu_custom_call.1']
    #allocation4 [shape = 's32[1]{0}', space=sflag, size = 0x4, scoped, tag = 'scoped memory for tpu_custom_call.1']
    #allocation5 [shape = 'u8[32768]{0}', space=vmem, size = 0x8000, scoped, tag = 'input window, operand 1, single buffered']
    #allocation6 [shape = 's32[1]{0}', space=sflag, size = 0x4, scoped, tag = 'scoped memory for tpu_custom_call.1']
    #allocation7 [shape = 'u8[32768]{0}', space=vmem, size = 0x8000, scoped, tag = 'input window, operand 2, single buffered']
    #allocation8 [shape = 'u8[32768]{0}', space=vmem, size = 0x8000, scoped, tag = 'input window, operand 4, single buffered']
    #allocation9 [shape = 's32[1]{0}', space=sflag, size = 0x4, scoped, tag = 'scoped memory for tpu_custom_call.1']
    #allocation10 [shape = 'u8[32768]{0}', space=vmem, size = 0x8000, scoped, tag = 'input window, operand 5, single buffered']
    #allocation11 [shape = 'u8[32768]{0}', space=vmem, size = 0x8000, scoped, tag = 'input window, operand 7, single buffered']
    #allocation12 [shape = 's32[1]{0}', space=sflag, size = 0x4, scoped, tag = 'scoped memory for tpu_custom_call.1']
    #allocation13 [shape = 'u8[32768]{0}', space=vmem, size = 0x8000, scoped, tag = 'input window, operand 8, single buffered']
    #allocation14 [shape = 'u8[4096]{0}', space=vmem, size = 0x1000, scoped, tag = 'output window, operand 0, single buffered']
    %15 = vsyncpa [#allocation3], 0
    %16 = vsyncpa [#allocation6], 0
    %17 = vsyncpa [#allocation9], 0
    %18 = vsyncpa [#allocation12], 0
    %19 = vsyncpa [#allocation4], 0
    // Predicated region
    $region2: #{tpu_custom_call.1} parent=1 // pred_check
      _
    $region3: #{tpu_custom_call.1} parent=1 // pred_check_branch
      %21 = sbr.rel (0) target = $region5
    $region4: #{tpu_custom_call.1} parent=1 // pred_region
      %s23 = ssub.s32 64, 64
      %24 = vsyncadd [#allocation3], %s23
      %s26 = sshll.u32 [#allocation2], 4
      %s27 = int_to_ptr.vmem [resolvable:$true] %s26
      %29 = dma.hbm_to_vmem [thread:$0]  %s0, 64, %s27, [#allocation3]
    $region5: #{tpu_custom_call.1} parent=1 // pred_fallthru
      _
    // Predicated region
    $region6: #{tpu_custom_call.1} parent=1 // pred_check
      _
    $region7: #{tpu_custom_call.1} parent=1 // pred_check_branch
      %31 = sbr.rel (0) target = $region9
    $region8: #{tpu_custom_call.1} parent=1 // pred_region
      %s33 = ssub.s32 1024, 1024
      %34 = vsyncadd [#allocation6], %s33
      %s35 = sshll.u32 [#allocation5], 4
      %s36 = int_to_ptr.vmem [resolvable:$true] %s35
      %41 = dma.hbm_to_vmem [thread:$0]  %s1, 1024, %s36, [#allocation6], 64, 64, 4
    $region9: #{tpu_custom_call.1} parent=1 // pred_fallthru
      _
    // Predicated region
    $region10: #{tpu_custom_call.1} parent=1 // pred_check
      _
    $region11: #{tpu_custom_call.1} parent=1 // pred_check_branch
      %43 = sbr.rel (0) target = $region13
    $region12: #{tpu_custom_call.1} parent=1 // pred_region
      %s45 = ssub.s32 1024, 1024
      %46 = vsyncadd [#allocation6], %s45
      %s47 = sshll.u32 [#allocation7], 4
      %s48 = int_to_ptr.vmem [resolvable:$true] %s47
      %53 = dma.hbm_to_vmem [thread:$0]  %s2, 1024, %s48, [#allocation6], 64, 64, 4
    $region13: #{tpu_custom_call.1} parent=1 // pred_fallthru
      _
    // Predicated region
    $region14: #{tpu_custom_call.1} parent=1 // pred_check
      _
    $region15: #{tpu_custom_call.1} parent=1 // pred_check_branch
      %55 = sbr.rel (0) target = $region17
    $region16: #{tpu_custom_call.1} parent=1 // pred_region
      _
    $region17: #{tpu_custom_call.1} parent=1 // pred_fallthru
      _
    // Predicated region
    $region18: #{tpu_custom_call.1} parent=1 // pred_check
      _
    $region19: #{tpu_custom_call.1} parent=1 // pred_check_branch
      %57 = sbr.rel (0) target = $region21
    $region20: #{tpu_custom_call.1} parent=1 // pred_region
      %s59 = ssub.s32 1024, 1024
      %60 = vsyncadd [#allocation9], %s59
      %s61 = sshll.u32 [#allocation8], 4
      %s62 = int_to_ptr.vmem [resolvable:$true] %s61
      %67 = dma.hbm_to_vmem [thread:$0]  %s4, 1024, %s62, [#allocation9], 64, 64, 4
    $region21: #{tpu_custom_call.1} parent=1 // pred_fallthru
      _
    // Predicated region
    $region22: #{tpu_custom_call.1} parent=1 // pred_check
      _
    $region23: #{tpu_custom_call.1} parent=1 // pred_check_branch
      %69 = sbr.rel (0) target = $region25
    $region24: #{tpu_custom_call.1} parent=1 // pred_region
      %s71 = ssub.s32 1024, 1024
      %72 = vsyncadd [#allocation9], %s71
      %s73 = sshll.u32 [#allocation10], 4
      %s74 = int_to_ptr.vmem [resolvable:$true] %s73
      %79 = dma.hbm_to_vmem [thread:$0]  %s5, 1024, %s74, [#allocation9], 64, 64, 4
    $region25: #{tpu_custom_call.1} parent=1 // pred_fallthru
      _
    // Predicated region
    $region26: #{tpu_custom_call.1} parent=1 // pred_check
      _
    $region27: #{tpu_custom_call.1} parent=1 // pred_check_branch
      %81 = sbr.rel (0) target = $region29
    $region28: #{tpu_custom_call.1} parent=1 // pred_region
      _
    $region29: #{tpu_custom_call.1} parent=1 // pred_fallthru
      _
    // Predicated region
    $region30: #{tpu_custom_call.1} parent=1 // pred_check
      _
    $region31: #{tpu_custom_call.1} parent=1 // pred_check_branch
      %83 = sbr.rel (0) target = $region33
    $region32: #{tpu_custom_call.1} parent=1 // pred_region
      %s85 = ssub.s32 1024, 1024
      %86 = vsyncadd [#allocation12], %s85
      %s87 = sshll.u32 [#allocation11], 4
      %s88 = int_to_ptr.vmem [resolvable:$true] %s87
      %93 = dma.hbm_to_vmem [thread:$0]  %s7, 1024, %s88, [#allocation12], 64, 64, 4
    $region33: #{tpu_custom_call.1} parent=1 // pred_fallthru
      _
    // Predicated region
    $region34: #{tpu_custom_call.1} parent=1 // pred_check
      _
    $region35: #{tpu_custom_call.1} parent=1 // pred_check_branch
      %95 = sbr.rel (0) target = $region37
    $region36: #{tpu_custom_call.1} parent=1 // pred_region
      %s97 = ssub.s32 1024, 1024
      %98 = vsyncadd [#allocation12], %s97
      %s99 = sshll.u32 [#allocation13], 4
      %s100 = int_to_ptr.vmem [resolvable:$true] %s99
      %105 = dma.hbm_to_vmem [thread:$0]  %s8, 1024, %s100, [#allocation12], 64, 64, 4
    $region37: #{tpu_custom_call.1} parent=1 // pred_fallthru
      _
    // Predicated region
    $region38: #{tpu_custom_call.1} parent=1 // pred_check
      _
    $region39: #{tpu_custom_call.1} parent=1 // pred_check_branch
      %107 = sbr.rel (0) target = $region41
    $region40: #{tpu_custom_call.1} parent=1 // pred_region
      _
    $region41: #{tpu_custom_call.1} parent=1 // pred_fallthru
      _
    // Predicated region
    $region42: #{tpu_custom_call.1} parent=1 // pred_check
      _
    $region43: #{tpu_custom_call.1} parent=1 // pred_check_branch
      %109 = sbr.rel (0) target = $region45
    $region44: #{tpu_custom_call.1} parent=1 // pred_region
      %110 = dma.done [#allocation3], 64
    $region45: #{tpu_custom_call.1} parent=1 // pred_fallthru
      _
    // Predicated region
    $region46: #{tpu_custom_call.1} parent=1 // pred_check
      _
    $region47: #{tpu_custom_call.1} parent=1 // pred_check_branch
      %112 = sbr.rel (0) target = $region49
    $region48: #{tpu_custom_call.1} parent=1 // pred_region
      %113 = dma.done [#allocation6], 1024
    $region49: #{tpu_custom_call.1} parent=1 // pred_fallthru
      _
    // Predicated region
    $region50: #{tpu_custom_call.1} parent=1 // pred_check
      _
    $region51: #{tpu_custom_call.1} parent=1 // pred_check_branch
      %115 = sbr.rel (0) target = $region53
    $region52: #{tpu_custom_call.1} parent=1 // pred_region
      %116 = dma.done [#allocation6], 1024
    $region53: #{tpu_custom_call.1} parent=1 // pred_fallthru
      _
    // Predicated region
    $region54: #{tpu_custom_call.1} parent=1 // pred_check
      _
    $region55: #{tpu_custom_call.1} parent=1 // pred_check_branch
      %118 = sbr.rel (0) target = $region57
    $region56: #{tpu_custom_call.1} parent=1 // pred_region
      %119 = dma.done [#allocation9], 1024
    $region57: #{tpu_custom_call.1} parent=1 // pred_fallthru
      _
    // Predicated region
    $region58: #{tpu_custom_call.1} parent=1 // pred_check
      _
    $region59: #{tpu_custom_call.1} parent=1 // pred_check_branch
      %121 = sbr.rel (0) target = $region61
    $region60: #{tpu_custom_call.1} parent=1 // pred_region
      %122 = dma.done [#allocation9], 1024
    $region61: #{tpu_custom_call.1} parent=1 // pred_fallthru
      _
    // Predicated region
    $region62: #{tpu_custom_call.1} parent=1 // pred_check
      _
    $region63: #{tpu_custom_call.1} parent=1 // pred_check_branch
      %124 = sbr.rel (0) target = $region65
    $region64: #{tpu_custom_call.1} parent=1 // pred_region
      %125 = dma.done [#allocation12], 1024
    $region65: #{tpu_custom_call.1} parent=1 // pred_fallthru
      _
    // Predicated region
    $region66: #{tpu_custom_call.1} parent=1 // pred_check
      _
    $region67: #{tpu_custom_call.1} parent=1 // pred_check_branch
      %127 = sbr.rel (0) target = $region69
    $region68: #{tpu_custom_call.1} parent=1 // pred_region
      %128 = dma.done [#allocation12], 1024
    $region69: #{tpu_custom_call.1} parent=1 // pred_fallthru
      _
    %v130 = vld [vmem:[#allocation2] sm:$0xf]
    %v131 = vld [vmem:[%s3] sm:$0xf]
    %v132 = vld [vmem:[#allocation5] sm:$0xf]
    %v133 = vld [vmem:[#allocation5 + $0x4] sm:$0xf]
    %v134 = vld [vmem:[#allocation5 + $0x8] sm:$0xf]
    %v135 = vld [vmem:[#allocation5 + $0xc] sm:$0xf]
    %v136 = vld [vmem:[#allocation5 + $0x10] sm:$0xf]
    %v137 = vld [vmem:[#allocation5 + $0x14] sm:$0xf]
    %v138 = vld [vmem:[#allocation5 + $0x18] sm:$0xf]
    %v139 = vld [vmem:[#allocation5 + $0x1c] sm:$0xf]
    %v140 = vld [vmem:[#allocation5 + $0x20] sm:$0xf]
    %v141 = vld [vmem:[#allocation5 + $0x24] sm:$0xf]
    %v142 = vld [vmem:[#allocation5 + $0x28] sm:$0xf]
    %v143 = vld [vmem:[#allocation5 + $0x2c] sm:$0xf]
    %v144 = vld [vmem:[#allocation5 + $0x30] sm:$0xf]
    %v145 = vld [vmem:[#allocation5 + $0x34] sm:$0xf]
    %v146 = vld [vmem:[#allocation5 + $0x38] sm:$0xf]
    %v147 = vld [vmem:[#allocation5 + $0x3c] sm:$0xf]
    %v148 = vlaneseq
    %v149 = vshrl.u32 %v148, 7
    %v150 = vsub.s32 0, %v149
    %v151 = vrot.slane %v131, %v150
    %v168 = vunpack.c.l.b16 %v132
    %v169 = vunpack.c.l.b16 %v133
    %v170 = vunpack.c.l.b16 %v134
    %v171 = vunpack.c.l.b16 %v135
    %v172 = vunpack.c.l.b16 %v136
    %v173 = vunpack.c.l.b16 %v137
    %v174 = vunpack.c.l.b16 %v138
    %v175 = vunpack.c.l.b16 %v139
    %v176 = vunpack.c.l.b16 %v140
    %v177 = vunpack.c.l.b16 %v141
    %v178 = vunpack.c.l.b16 %v142
    %v179 = vunpack.c.l.b16 %v143
    %v180 = vunpack.c.l.b16 %v144
    %v181 = vunpack.c.l.b16 %v145
    %v182 = vunpack.c.l.b16 %v146
    %v183 = vunpack.c.l.b16 %v147
    %v184 = vpack.c.b16 %v169, %v168
    %v185 = vpack.c.b16 %v171, %v170
    %v186 = vpack.c.b16 %v173, %v172
    %v187 = vpack.c.b16 %v175, %v174
    %v188 = vpack.c.b16 %v177, %v176
    %v189 = vpack.c.b16 %v179, %v178
    %v190 = vpack.c.b16 %v181, %v180
    %v191 = vpack.c.b16 %v183, %v182
    %200 = vmatprep.subr.bf16.mxu0 0
    %201 = vmatpush1.bf16.msra.mxu0 %v191
    %202 = vmatprep.subr.bf16.mxu0 0
    %203 = vmatpush1.bf16.msra.mxu0 %v190
    %204 = vmatprep.subr.bf16.mxu0 0
    %205 = vmatpush1.bf16.msra.mxu0 %v189
    %206 = vmatprep.subr.bf16.mxu0 0
    %207 = vmatpush1.bf16.msra.mxu0 %v188
    %208 = vmatprep.subr.bf16.mxu0 0
    %209 = vmatpush1.bf16.msra.mxu0 %v187
    %210 = vmatprep.subr.bf16.mxu0 0
    %211 = vmatpush1.bf16.msra.mxu0 %v186
    %212 = vmatprep.subr.bf16.mxu0 0
    %213 = vmatpush1.bf16.msra.mxu0 %v185
    %214 = vmatprep.subr.bf16.mxu0 0
    %215 = vmatpush1.bf16.msra.mxu0 %v184
    %216 = vmatprep.subr.bf16.mxu0 0
    %217 = vmatpush2.bf16.msra.mxu0 0
    %218 = vmatprep.subr.bf16.mxu0 0
    %219 = vmatpush2.bf16.msra.mxu0 0
    %220 = vmatprep.subr.bf16.mxu0 0
    %221 = vmatpush2.bf16.msra.mxu0 0
    %222 = vmatprep.subr.bf16.mxu0 0
    %223 = vmatpush2.bf16.msra.mxu0 0
    %224 = vmatprep.subr.bf16.mxu0 0
    %225 = vmatpush2.bf16.msra.mxu0 0
    %226 = vmatprep.subr.bf16.mxu0 0
    %227 = vmatpush2.bf16.msra.mxu0 0
    %228 = vmatprep.subr.bf16.mxu0 0
    %229 = vmatpush2.bf16.msra.mxu0 0
    %230 = vmatprep.subr.bf16.mxu0 0
    %231 = vmatpush2.bf16.msra.mxu0 0
    %232 = vmatprep.mubr.bf16.mxu0 0
    %233 = vmatmul.mubr.bf16.gmra.mxu0 %v130
    %v234 = vpop.f32.mrf.mxu0
    %v235 = vadd.f32 %v151, %v234
    %v236 = vpop.f32.mrf.mxu0
    %v237 = vpop.f32.mrf.mxu0
    %v238 = vpop.f32.mrf.mxu0
    %239 = vdwg.mxu0
    %v240 = vmul.f32 %v235, -1.702
    %v241 = vmul.f32 %v240, 1.442695
    %v242 = vpow.pop %v241
    %v243 = vadd.f32 %v242, 1.0
    %v244 = vrcp.pop %v243
    %v245 = vmul.f32 %v235, %v244
    %v246 = vpack.c.bf16 %v245, %v245
    %v247 = vld [vmem:[#allocation7] sm:$0xf]
    %v248 = vld [vmem:[#allocation7 + $0x4] sm:$0xf]
    %v249 = vld [vmem:[#allocation7 + $0x8] sm:$0xf]
    %v250 = vld [vmem:[#allocation7 + $0xc] sm:$0xf]
    %v251 = vld [vmem:[#allocation7 + $0x10] sm:$0xf]
    %v252 = vld [vmem:[#allocation7 + $0x14] sm:$0xf]
    %v253 = vld [vmem:[#allocation7 + $0x18] sm:$0xf]
    %v254 = vld [vmem:[#allocation7 + $0x1c] sm:$0xf]
    %v255 = vld [vmem:[#allocation7 + $0x20] sm:$0xf]
    %v256 = vld [vmem:[#allocation7 + $0x24] sm:$0xf]
    %v257 = vld [vmem:[#allocation7 + $0x28] sm:$0xf]
    %v258 = vld [vmem:[#allocation7 + $0x2c] sm:$0xf]
    %v259 = vld [vmem:[#allocation7 + $0x30] sm:$0xf]
    %v260 = vld [vmem:[#allocation7 + $0x34] sm:$0xf]
    %v261 = vld [vmem:[#allocation7 + $0x38] sm:$0xf]
    %v262 = vld [vmem:[#allocation7 + $0x3c] sm:$0xf]
    %v263 = vlaneseq
    %v264 = vshrl.u32 %v263, 7
    %v265 = vsub.s32 1, %v264
    %v266 = vrot.slane %v131, %v265
    %v283 = vunpack.c.l.b16 %v247
    %v284 = vunpack.c.l.b16 %v248
    %v285 = vunpack.c.l.b16 %v249
    %v286 = vunpack.c.l.b16 %v250
    %v287 = vunpack.c.l.b16 %v251
    %v288 = vunpack.c.l.b16 %v252
    %v289 = vunpack.c.l.b16 %v253
    %v290 = vunpack.c.l.b16 %v254
    %v291 = vunpack.c.l.b16 %v255
    %v292 = vunpack.c.l.b16 %v256
    %v293 = vunpack.c.l.b16 %v257
    %v294 = vunpack.c.l.b16 %v258
    %v295 = vunpack.c.l.b16 %v259
    %v296 = vunpack.c.l.b16 %v260
    %v297 = vunpack.c.l.b16 %v261
    %v298 = vunpack.c.l.b16 %v262
    %v299 = vpack.c.b16 %v284, %v283
    %v300 = vpack.c.b16 %v286, %v285
    %v301 = vpack.c.b16 %v288, %v287
    %v302 = vpack.c.b16 %v290, %v289
    %v303 = vpack.c.b16 %v292, %v291
    %v304 = vpack.c.b16 %v294, %v293
    %v305 = vpack.c.b16 %v296, %v295
    %v306 = vpack.c.b16 %v298, %v297
    %315 = vmatprep.subr.bf16.mxu0 0
    %316 = vmatpush1.bf16.msra.mxu0 %v306
    %317 = vmatprep.subr.bf16.mxu0 0
    %318 = vmatpush1.bf16.msra.mxu0 %v305
    %319 = vmatprep.subr.bf16.mxu0 0
    %320 = vmatpush1.bf16.msra.mxu0 %v304
    %321 = vmatprep.subr.bf16.mxu0 0
    %322 = vmatpush1.bf16.msra.mxu0 %v303
    %323 = vmatprep.subr.bf16.mxu0 0
    %324 = vmatpush1.bf16.msra.mxu0 %v302
    %325 = vmatprep.subr.bf16.mxu0 0
    %326 = vmatpush1.bf16.msra.mxu0 %v301
    %327 = vmatprep.subr.bf16.mxu0 0
    %328 = vmatpush1.bf16.msra.mxu0 %v300
    %329 = vmatprep.subr.bf16.mxu0 0
    %330 = vmatpush1.bf16.msra.mxu0 %v299
    %331 = vmatprep.subr.bf16.mxu0 0
    %332 = vmatpush2.bf16.msra.mxu0 0
    %333 = vmatprep.subr.bf16.mxu0 0
    %334 = vmatpush2.bf16.msra.mxu0 0
    %335 = vmatprep.subr.bf16.mxu0 0
    %336 = vmatpush2.bf16.msra.mxu0 0
    %337 = vmatprep.subr.bf16.mxu0 0
    %338 = vmatpush2.bf16.msra.mxu0 0
    %339 = vmatprep.subr.bf16.mxu0 0
    %340 = vmatpush2.bf16.msra.mxu0 0
    %341 = vmatprep.subr.bf16.mxu0 0
    %342 = vmatpush2.bf16.msra.mxu0 0
    %343 = vmatprep.subr.bf16.mxu0 0
    %344 = vmatpush2.bf16.msra.mxu0 0
    %345 = vmatprep.subr.bf16.mxu0 0
    %346 = vmatpush2.bf16.msra.mxu0 0
    %347 = vmatprep.mubr.bf16.mxu0 0
    %348 = vmatmul.mubr.bf16.gmra.mxu0 %v246
    %v349 = vpop.f32.mrf.mxu0
    %v350 = vadd.f32 %v266, %v349
    %v351 = vpop.f32.mrf.mxu0
    %v352 = vpop.f32.mrf.mxu0
    %v353 = vpop.f32.mrf.mxu0
    %354 = vdwg.mxu0
    %v355 = vadd.f32 %v235, %v350
    %356 = vadd.xlane.f32.xlu0 %v355
    %v357 = vpop.xlane.xlu0 %356
    %v358 = vmul.f32 %v357, 0.03125
    %v359 = vmul.f32 %v355, %v355
    %360 = vadd.xlane.f32.xlu0 %v359
    %v361 = vpop.xlane.xlu0 %360
    %v362 = vmul.f32 %v361, 0.03125
    %v363 = vmul.f32 %v358, %v358
    %v364 = vsub.f32 %v362, %v363
    %v365 = vsub.f32 %v355, %v358
    %v366 = vadd.f32 %v364, 1e-05
    %v367 = vrsqrt.pop %v366
    %v368 = vmul.f32 %v365, %v367
    %v369 = vlaneseq
    %v370 = vshrl.u32 %v369, 7
    %v371 = vsub.s32 2, %v370
    %v372 = vrot.slane %v131, %v371
    %v373 = vmul.f32 %v368, %v372
    %v374 = vlaneseq
    %v375 = vshrl.u32 %v374, 7
    %v376 = vsub.s32 3, %v375
    %v377 = vrot.slane %v131, %v376
    %v378 = vadd.f32 %v373, %v377
    %v379 = vld [vmem:[%s6] sm:$0xf]
    %v380 = vpack.c.bf16 %v378, %v378
    %v381 = vld [vmem:[#allocation8] sm:$0xf]
    %v382 = vld [vmem:[#allocation8 + $0x4] sm:$0xf]
    %v383 = vld [vmem:[#allocation8 + $0x8] sm:$0xf]
    %v384 = vld [vmem:[#allocation8 + $0xc] sm:$0xf]
    %v385 = vld [vmem:[#allocation8 + $0x10] sm:$0xf]
    %v386 = vld [vmem:[#allocation8 + $0x14] sm:$0xf]
    %v387 = vld [vmem:[#allocation8 + $0x18] sm:$0xf]
    %v388 = vld [vmem:[#allocation8 + $0x1c] sm:$0xf]
    %v389 = vld [vmem:[#allocation8 + $0x20] sm:$0xf]
    %v390 = vld [vmem:[#allocation8 + $0x24] sm:$0xf]
    %v391 = vld [vmem:[#allocation8 + $0x28] sm:$0xf]
    %v392 = vld [vmem:[#allocation8 + $0x2c] sm:$0xf]
    %v393 = vld [vmem:[#allocation8 + $0x30] sm:$0xf]
    %v394 = vld [vmem:[#allocation8 + $0x34] sm:$0xf]
    %v395 = vld [vmem:[#allocation8 + $0x38] sm:$0xf]
    %v396 = vld [vmem:[#allocation8 + $0x3c] sm:$0xf]
    %v397 = vlaneseq
    %v398 = vshrl.u32 %v397, 7
    %v399 = vsub.s32 0, %v398
    %v400 = vrot.slane %v379, %v399
    %v417 = vunpack.c.l.b16 %v381
    %v418 = vunpack.c.l.b16 %v382
    %v419 = vunpack.c.l.b16 %v383
    %v420 = vunpack.c.l.b16 %v384
    %v421 = vunpack.c.l.b16 %v385
    %v422 = vunpack.c.l.b16 %v386
    %v423 = vunpack.c.l.b16 %v387
    %v424 = vunpack.c.l.b16 %v388
    %v425 = vunpack.c.l.b16 %v389
    %v426 = vunpack.c.l.b16 %v390
    %v427 = vunpack.c.l.b16 %v391
    %v428 = vunpack.c.l.b16 %v392
    %v429 = vunpack.c.l.b16 %v393
    %v430 = vunpack.c.l.b16 %v394
    %v431 = vunpack.c.l.b16 %v395
    %v432 = vunpack.c.l.b16 %v396
    %v433 = vpack.c.b16 %v418, %v417
    %v434 = vpack.c.b16 %v420, %v419
    %v435 = vpack.c.b16 %v422, %v421
    %v436 = vpack.c.b16 %v424, %v423
    %v437 = vpack.c.b16 %v426, %v425
    %v438 = vpack.c.b16 %v428, %v427
    %v439 = vpack.c.b16 %v430, %v429
    %v440 = vpack.c.b16 %v432, %v431
    %449 = vmatprep.subr.bf16.mxu0 0
    %450 = vmatpush1.bf16.msra.mxu0 %v440
    %451 = vmatprep.subr.bf16.mxu0 0
    %452 = vmatpush1.bf16.msra.mxu0 %v439
    %453 = vmatprep.subr.bf16.mxu0 0
    %454 = vmatpush1.bf16.msra.mxu0 %v438
    %455 = vmatprep.subr.bf16.mxu0 0
    %456 = vmatpush1.bf16.msra.mxu0 %v437
    %457 = vmatprep.subr.bf16.mxu0 0
    %458 = vmatpush1.bf16.msra.mxu0 %v436
    %459 = vmatprep.subr.bf16.mxu0 0
    %460 = vmatpush1.bf16.msra.mxu0 %v435
    %461 = vmatprep.subr.bf16.mxu0 0
    %462 = vmatpush1.bf16.msra.mxu0 %v434
    %463 = vmatprep.subr.bf16.mxu0 0
    %464 = vmatpush1.bf16.msra.mxu0 %v433
    %465 = vmatprep.subr.bf16.mxu0 0
    %466 = vmatpush2.bf16.msra.mxu0 0
    %467 = vmatprep.subr.bf16.mxu0 0
    %468 = vmatpush2.bf16.msra.mxu0 0
    %469 = vmatprep.subr.bf16.mxu0 0
    %470 = vmatpush2.bf16.msra.mxu0 0
    %471 = vmatprep.subr.bf16.mxu0 0
    %472 = vmatpush2.bf16.msra.mxu0 0
    %473 = vmatprep.subr.bf16.mxu0 0
    %474 = vmatpush2.bf16.msra.mxu0 0
    %475 = vmatprep.subr.bf16.mxu0 0
    %476 = vmatpush2.bf16.msra.mxu0 0
    %477 = vmatprep.subr.bf16.mxu0 0
    %478 = vmatpush2.bf16.msra.mxu0 0
    %479 = vmatprep.subr.bf16.mxu0 0
    %480 = vmatpush2.bf16.msra.mxu0 0
    %481 = vmatprep.mubr.bf16.mxu0 0
    %482 = vmatmul.mubr.bf16.gmra.mxu0 %v380
    %v483 = vpop.f32.mrf.mxu0
    %v484 = vadd.f32 %v400, %v483
    %v485 = vpop.f32.mrf.mxu0
    %v486 = vpop.f32.mrf.mxu0
    %v487 = vpop.f32.mrf.mxu0
    %488 = vdwg.mxu0
    %v489 = vmul.f32 %v484, -1.702
    %v490 = vmul.f32 %v489, 1.442695
    %v491 = vpow.pop %v490
    %v492 = vadd.f32 %v491, 1.0
    %v493 = vrcp.pop %v492
    %v494 = vmul.f32 %v484, %v493
    %v495 = vpack.c.bf16 %v494, %v494
    %v496 = vld [vmem:[#allocation10] sm:$0xf]
    %v497 = vld [vmem:[#allocation10 + $0x4] sm:$0xf]
    %v498 = vld [vmem:[#allocation10 + $0x8] sm:$0xf]
    %v499 = vld [vmem:[#allocation10 + $0xc] sm:$0xf]
    %v500 = vld [vmem:[#allocation10 + $0x10] sm:$0xf]
    %v501 = vld [vmem:[#allocation10 + $0x14] sm:$0xf]
    %v502 = vld [vmem:[#allocation10 + $0x18] sm:$0xf]
    %v503 = vld [vmem:[#allocation10 + $0x1c] sm:$0xf]
    %v504 = vld [vmem:[#allocation10 + $0x20] sm:$0xf]
    %v505 = vld [vmem:[#allocation10 + $0x24] sm:$0xf]
    %v506 = vld [vmem:[#allocation10 + $0x28] sm:$0xf]
    %v507 = vld [vmem:[#allocation10 + $0x2c] sm:$0xf]
    %v508 = vld [vmem:[#allocation10 + $0x30] sm:$0xf]
    %v509 = vld [vmem:[#allocation10 + $0x34] sm:$0xf]
    %v510 = vld [vmem:[#allocation10 + $0x38] sm:$0xf]
    %v511 = vld [vmem:[#allocation10 + $0x3c] sm:$0xf]
    %v512 = vlaneseq
    %v513 = vshrl.u32 %v512, 7
    %v514 = vsub.s32 1, %v513
    %v515 = vrot.slane %v379, %v514
    %v532 = vunpack.c.l.b16 %v496
    %v533 = vunpack.c.l.b16 %v497
    %v534 = vunpack.c.l.b16 %v498
    %v535 = vunpack.c.l.b16 %v499
    %v536 = vunpack.c.l.b16 %v500
    %v537 = vunpack.c.l.b16 %v501
    %v538 = vunpack.c.l.b16 %v502
    %v539 = vunpack.c.l.b16 %v503
    %v540 = vunpack.c.l.b16 %v504
    %v541 = vunpack.c.l.b16 %v505
    %v542 = vunpack.c.l.b16 %v506
    %v543 = vunpack.c.l.b16 %v507
    %v544 = vunpack.c.l.b16 %v508
    %v545 = vunpack.c.l.b16 %v509
    %v546 = vunpack.c.l.b16 %v510
    %v547 = vunpack.c.l.b16 %v511
    %v548 = vpack.c.b16 %v533, %v532
    %v549 = vpack.c.b16 %v535, %v534
    %v550 = vpack.c.b16 %v537, %v536
    %v551 = vpack.c.b16 %v539, %v538
    %v552 = vpack.c.b16 %v541, %v540
    %v553 = vpack.c.b16 %v543, %v542
    %v554 = vpack.c.b16 %v545, %v544
    %v555 = vpack.c.b16 %v547, %v546
    %564 = vmatprep.subr.bf16.mxu0 0
    %565 = vmatpush1.bf16.msra.mxu0 %v555
    %566 = vmatprep.subr.bf16.mxu0 0
    %567 = vmatpush1.bf16.msra.mxu0 %v554
    %568 = vmatprep.subr.bf16.mxu0 0
    %569 = vmatpush1.bf16.msra.mxu0 %v553
    %570 = vmatprep.subr.bf16.mxu0 0
    %571 = vmatpush1.bf16.msra.mxu0 %v552
    %572 = vmatprep.subr.bf16.mxu0 0
    %573 = vmatpush1.bf16.msra.mxu0 %v551
    %574 = vmatprep.subr.bf16.mxu0 0
    %575 = vmatpush1.bf16.msra.mxu0 %v550
    %576 = vmatprep.subr.bf16.mxu0 0
    %577 = vmatpush1.bf16.msra.mxu0 %v549
    %578 = vmatprep.subr.bf16.mxu0 0
    %579 = vmatpush1.bf16.msra.mxu0 %v548
    %580 = vmatprep.subr.bf16.mxu0 0
    %581 = vmatpush2.bf16.msra.mxu0 0
    %582 = vmatprep.subr.bf16.mxu0 0
    %583 = vmatpush2.bf16.msra.mxu0 0
    %584 = vmatprep.subr.bf16.mxu0 0
    %585 = vmatpush2.bf16.msra.mxu0 0
    %586 = vmatprep.subr.bf16.mxu0 0
    %587 = vmatpush2.bf16.msra.mxu0 0
    %588 = vmatprep.subr.bf16.mxu0 0
    %589 = vmatpush2.bf16.msra.mxu0 0
    %590 = vmatprep.subr.bf16.mxu0 0
    %591 = vmatpush2.bf16.msra.mxu0 0
    %592 = vmatprep.subr.bf16.mxu0 0
    %593 = vmatpush2.bf16.msra.mxu0 0
    %594 = vmatprep.subr.bf16.mxu0 0
    %595 = vmatpush2.bf16.msra.mxu0 0
    %596 = vmatprep.mubr.bf16.mxu0 0
    %597 = vmatmul.mubr.bf16.gmra.mxu0 %v495
    %v598 = vpop.f32.mrf.mxu0
    %v599 = vadd.f32 %v515, %v598
    %v600 = vpop.f32.mrf.mxu0
    %v601 = vpop.f32.mrf.mxu0
    %v602 = vpop.f32.mrf.mxu0
    %603 = vdwg.mxu0
    %v604 = vadd.f32 %v484, %v599
    %605 = vadd.xlane.f32.xlu0 %v604
    %v606 = vpop.xlane.xlu0 %605
    %v607 = vmul.f32 %v606, 0.03125
    %v608 = vmul.f32 %v604, %v604
    %609 = vadd.xlane.f32.xlu0 %v608
    %v610 = vpop.xlane.xlu0 %609
    %v611 = vmul.f32 %v610, 0.03125
    %v612 = vmul.f32 %v607, %v607
    %v613 = vsub.f32 %v611, %v612
    %v614 = vsub.f32 %v604, %v607
    %v615 = vadd.f32 %v613, 1e-05
    %v616 = vrsqrt.pop %v615
    %v617 = vmul.f32 %v614, %v616
    %v618 = vlaneseq
    %v619 = vshrl.u32 %v618, 7
    %v620 = vsub.s32 2, %v619
    %v621 = vrot.slane %v379, %v620
    %v622 = vmul.f32 %v617, %v621
    %v623 = vlaneseq
    %v624 = vshrl.u32 %v623, 7
    %v625 = vsub.s32 3, %v624
    %v626 = vrot.slane %v379, %v625
    %v627 = vadd.f32 %v622, %v626
    %v628 = vld [vmem:[%s9] sm:$0xf]
    %v629 = vpack.c.bf16 %v627, %v627
    %v630 = vld [vmem:[#allocation11] sm:$0xf]
    %v631 = vld [vmem:[#allocation11 + $0x4] sm:$0xf]
    %v632 = vld [vmem:[#allocation11 + $0x8] sm:$0xf]
    %v633 = vld [vmem:[#allocation11 + $0xc] sm:$0xf]
    %v634 = vld [vmem:[#allocation11 + $0x10] sm:$0xf]
    %v635 = vld [vmem:[#allocation11 + $0x14] sm:$0xf]
    %v636 = vld [vmem:[#allocation11 + $0x18] sm:$0xf]
    %v637 = vld [vmem:[#allocation11 + $0x1c] sm:$0xf]
    %v638 = vld [vmem:[#allocation11 + $0x20] sm:$0xf]
    %v639 = vld [vmem:[#allocation11 + $0x24] sm:$0xf]
    %v640 = vld [vmem:[#allocation11 + $0x28] sm:$0xf]
    %v641 = vld [vmem:[#allocation11 + $0x2c] sm:$0xf]
    %v642 = vld [vmem:[#allocation11 + $0x30] sm:$0xf]
    %v643 = vld [vmem:[#allocation11 + $0x34] sm:$0xf]
    %v644 = vld [vmem:[#allocation11 + $0x38] sm:$0xf]
    %v645 = vld [vmem:[#allocation11 + $0x3c] sm:$0xf]
    %v646 = vlaneseq
    %v647 = vshrl.u32 %v646, 7
    %v648 = vsub.s32 0, %v647
    %v649 = vrot.slane %v628, %v648
    %v666 = vunpack.c.l.b16 %v630
    %v667 = vunpack.c.l.b16 %v631
    %v668 = vunpack.c.l.b16 %v632
    %v669 = vunpack.c.l.b16 %v633
    %v670 = vunpack.c.l.b16 %v634
    %v671 = vunpack.c.l.b16 %v635
    %v672 = vunpack.c.l.b16 %v636
    %v673 = vunpack.c.l.b16 %v637
    %v674 = vunpack.c.l.b16 %v638
    %v675 = vunpack.c.l.b16 %v639
    %v676 = vunpack.c.l.b16 %v640
    %v677 = vunpack.c.l.b16 %v641
    %v678 = vunpack.c.l.b16 %v642
    %v679 = vunpack.c.l.b16 %v643
    %v680 = vunpack.c.l.b16 %v644
    %v681 = vunpack.c.l.b16 %v645
    %v682 = vpack.c.b16 %v667, %v666
    %v683 = vpack.c.b16 %v669, %v668
    %v684 = vpack.c.b16 %v671, %v670
    %v685 = vpack.c.b16 %v673, %v672
    %v686 = vpack.c.b16 %v675, %v674
    %v687 = vpack.c.b16 %v677, %v676
    %v688 = vpack.c.b16 %v679, %v678
    %v689 = vpack.c.b16 %v681, %v680
    %698 = vmatprep.subr.bf16.mxu0 0
    %699 = vmatpush1.bf16.msra.mxu0 %v689
    %700 = vmatprep.subr.bf16.mxu0 0
    %701 = vmatpush1.bf16.msra.mxu0 %v688
    %702 = vmatprep.subr.bf16.mxu0 0
    %703 = vmatpush1.bf16.msra.mxu0 %v687
    %704 = vmatprep.subr.bf16.mxu0 0
    %705 = vmatpush1.bf16.msra.mxu0 %v686
    %706 = vmatprep.subr.bf16.mxu0 0
    %707 = vmatpush1.bf16.msra.mxu0 %v685
    %708 = vmatprep.subr.bf16.mxu0 0
    %709 = vmatpush1.bf16.msra.mxu0 %v684
    %710 = vmatprep.subr.bf16.mxu0 0
    %711 = vmatpush1.bf16.msra.mxu0 %v683
    %712 = vmatprep.subr.bf16.mxu0 0
    %713 = vmatpush1.bf16.msra.mxu0 %v682
    %714 = vmatprep.subr.bf16.mxu0 0
    %715 = vmatpush2.bf16.msra.mxu0 0
    %716 = vmatprep.subr.bf16.mxu0 0
    %717 = vmatpush2.bf16.msra.mxu0 0
    %718 = vmatprep.subr.bf16.mxu0 0
    %719 = vmatpush2.bf16.msra.mxu0 0
    %720 = vmatprep.subr.bf16.mxu0 0
    %721 = vmatpush2.bf16.msra.mxu0 0
    %722 = vmatprep.subr.bf16.mxu0 0
    %723 = vmatpush2.bf16.msra.mxu0 0
    %724 = vmatprep.subr.bf16.mxu0 0
    %725 = vmatpush2.bf16.msra.mxu0 0
    %726 = vmatprep.subr.bf16.mxu0 0
    %727 = vmatpush2.bf16.msra.mxu0 0
    %728 = vmatprep.subr.bf16.mxu0 0
    %729 = vmatpush2.bf16.msra.mxu0 0
    %730 = vmatprep.mubr.bf16.mxu0 0
    %731 = vmatmul.mubr.bf16.gmra.mxu0 %v629
    %v732 = vpop.f32.mrf.mxu0
    %v733 = vadd.f32 %v649, %v732
    %v734 = vpop.f32.mrf.mxu0
    %v735 = vpop.f32.mrf.mxu0
    %v736 = vpop.f32.mrf.mxu0
    %737 = vdwg.mxu0
    %v738 = vmul.f32 %v733, -1.702
    %v739 = vmul.f32 %v738, 1.442695
    %v740 = vpow.pop %v739
    %v741 = vadd.f32 %v740, 1.0
    %v742 = vrcp.pop %v741
    %v743 = vmul.f32 %v733, %v742
    %v744 = vpack.c.bf16 %v743, %v743
    %v745 = vld [vmem:[#allocation13] sm:$0xf]
    %v746 = vld [vmem:[#allocation13 + $0x4] sm:$0xf]
    %v747 = vld [vmem:[#allocation13 + $0x8] sm:$0xf]
    %v748 = vld [vmem:[#allocation13 + $0xc] sm:$0xf]
    %v749 = vld [vmem:[#allocation13 + $0x10] sm:$0xf]
    %v750 = vld [vmem:[#allocation13 + $0x14] sm:$0xf]
    %v751 = vld [vmem:[#allocation13 + $0x18] sm:$0xf]
    %v752 = vld [vmem:[#allocation13 + $0x1c] sm:$0xf]
    %v753 = vld [vmem:[#allocation13 + $0x20] sm:$0xf]
    %v754 = vld [vmem:[#allocation13 + $0x24] sm:$0xf]
    %v755 = vld [vmem:[#allocation13 + $0x28] sm:$0xf]
    %v756 = vld [vmem:[#allocation13 + $0x2c] sm:$0xf]
    %v757 = vld [vmem:[#allocation13 + $0x30] sm:$0xf]
    %v758 = vld [vmem:[#allocation13 + $0x34] sm:$0xf]
    %v759 = vld [vmem:[#allocation13 + $0x38] sm:$0xf]
    %v760 = vld [vmem:[#allocation13 + $0x3c] sm:$0xf]
    %v761 = vlaneseq
    %v762 = vshrl.u32 %v761, 7
    %v763 = vsub.s32 1, %v762
    %v764 = vrot.slane %v628, %v763
    %v781 = vunpack.c.l.b16 %v745
    %v782 = vunpack.c.l.b16 %v746
    %v783 = vunpack.c.l.b16 %v747
    %v784 = vunpack.c.l.b16 %v748
    %v785 = vunpack.c.l.b16 %v749
    %v786 = vunpack.c.l.b16 %v750
    %v787 = vunpack.c.l.b16 %v751
    %v788 = vunpack.c.l.b16 %v752
    %v789 = vunpack.c.l.b16 %v753
    %v790 = vunpack.c.l.b16 %v754
    %v791 = vunpack.c.l.b16 %v755
    %v792 = vunpack.c.l.b16 %v756
    %v793 = vunpack.c.l.b16 %v757
    %v794 = vunpack.c.l.b16 %v758
    %v795 = vunpack.c.l.b16 %v759
    %v796 = vunpack.c.l.b16 %v760
    %v797 = vpack.c.b16 %v782, %v781
    %v798 = vpack.c.b16 %v784, %v783
    %v799 = vpack.c.b16 %v786, %v785
    %v800 = vpack.c.b16 %v788, %v787
    %v801 = vpack.c.b16 %v790, %v789
    %v802 = vpack.c.b16 %v792, %v791
    %v803 = vpack.c.b16 %v794, %v793
    %v804 = vpack.c.b16 %v796, %v795
    %813 = vmatprep.subr.bf16.mxu0 0
    %814 = vmatpush1.bf16.msra.mxu0 %v804
    %815 = vmatprep.subr.bf16.mxu0 0
    %816 = vmatpush1.bf16.msra.mxu0 %v803
    %817 = vmatprep.subr.bf16.mxu0 0
    %818 = vmatpush1.bf16.msra.mxu0 %v802
    %819 = vmatprep.subr.bf16.mxu0 0
    %820 = vmatpush1.bf16.msra.mxu0 %v801
    %821 = vmatprep.subr.bf16.mxu0 0
    %822 = vmatpush1.bf16.msra.mxu0 %v800
    %823 = vmatprep.subr.bf16.mxu0 0
    %824 = vmatpush1.bf16.msra.mxu0 %v799
    %825 = vmatprep.subr.bf16.mxu0 0
    %826 = vmatpush1.bf16.msra.mxu0 %v798
    %827 = vmatprep.subr.bf16.mxu0 0
    %828 = vmatpush1.bf16.msra.mxu0 %v797
    %829 = vmatprep.subr.bf16.mxu0 0
    %830 = vmatpush2.bf16.msra.mxu0 0
    %831 = vmatprep.subr.bf16.mxu0 0
    %832 = vmatpush2.bf16.msra.mxu0 0
    %833 = vmatprep.subr.bf16.mxu0 0
    %834 = vmatpush2.bf16.msra.mxu0 0
    %835 = vmatprep.subr.bf16.mxu0 0
    %836 = vmatpush2.bf16.msra.mxu0 0
    %837 = vmatprep.subr.bf16.mxu0 0
    %838 = vmatpush2.bf16.msra.mxu0 0
    %839 = vmatprep.subr.bf16.mxu0 0
    %840 = vmatpush2.bf16.msra.mxu0 0
    %841 = vmatprep.subr.bf16.mxu0 0
    %842 = vmatpush2.bf16.msra.mxu0 0
    %843 = vmatprep.subr.bf16.mxu0 0
    %844 = vmatpush2.bf16.msra.mxu0 0
    %845 = vmatprep.mubr.bf16.mxu0 0
    %846 = vmatmul.mubr.bf16.gmra.mxu0 %v744
    %v847 = vpop.f32.mrf.mxu0
    %v848 = vadd.f32 %v764, %v847
    %v849 = vpop.f32.mrf.mxu0
    %v850 = vpop.f32.mrf.mxu0
    %v851 = vpop.f32.mrf.mxu0
    %852 = vdwg.mxu0
    %v853 = vadd.f32 %v733, %v848
    %854 = vadd.xlane.f32.xlu0 %v853
    %v855 = vpop.xlane.xlu0 %854
    %v856 = vmul.f32 %v855, 0.0625
    %v857 = vmul.f32 %v853, %v853
    %858 = vadd.xlane.f32.xlu0 %v857
    %v859 = vpop.xlane.xlu0 %858
    %v860 = vmul.f32 %v859, 0.0625
    %v861 = vmul.f32 %v856, %v856
    %v862 = vsub.f32 %v860, %v861
    %v863 = vsub.f32 %v853, %v856
    %v864 = vadd.f32 %v862, 1e-05
    %v865 = vrsqrt.pop %v864
    %v866 = vmul.f32 %v863, %v865
    %v867 = vlaneseq
    %v868 = vshrl.u32 %v867, 7
    %v869 = vsub.s32 2, %v868
    %v870 = vrot.slane %v628, %v869
    %v871 = vmul.f32 %v866, %v870
    %v872 = vlaneseq
    %v873 = vshrl.u32 %v872, 7
    %v874 = vsub.s32 3, %v873
    %v875 = vrot.slane %v628, %v874
    %v876 = vadd.f32 %v871, %v875
    %v877 = vlaneseq
    %v878 = vand.u32 %v877, 127
    %vm879 = vcmp.lt.s32.totalorder %v878, 16
    %v880 = vsel %vm879, %v876, -1e+30
    %881 = vmax.xlane.f32.xlu0 %v880
    %v882 = vpop.xlane.xlu0 %881
    %v883 = vsub.f32 %v880, %v882
    %v884 = vmul.f32 %v883, 1.442695
    %v885 = vpow.pop %v884
    %886 = vadd.xlane.f32.xlu0 %v885
    %v887 = vpop.xlane.xlu0 %886
    %v888 = vlog2.pop %v887
    %v889 = vmul.f32 %v888, 0.6931472
    %v890 = vsub.f32 %v883, %v889
    %891 = vst [vmem:[#allocation14] sm:$0xff] %v890
    // Predicated region
    $region70: #{tpu_custom_call.1} parent=1 // pred_check
      _
    $region71: #{tpu_custom_call.1} parent=1 // pred_check_branch
      %893 = sbr.rel (0) target = $region73
    $region72: #{tpu_custom_call.1} parent=1 // pred_region
      %s895 = ssub.s32 128, 128
      %896 = vsyncadd [#allocation4], %s895
      %s898 = sshll.u32 [#allocation14], 4
      %s899 = int_to_ptr.vmem [resolvable:$true] %s898
      %901 = dma.vmem_to_hbm [thread:$0]  %s899, 128, %s10, [#allocation4]
    $region73: #{tpu_custom_call.1} parent=1 // pred_fallthru
      _
    // Predicated region
    $region74: #{tpu_custom_call.1} parent=1 // pred_check
      _
    $region75: #{tpu_custom_call.1} parent=1 // pred_check_branch
      %903 = sbr.rel (0) target = $region77
    $region76: #{tpu_custom_call.1} parent=1 // pred_region
      %904 = dma.done [#allocation4], 128
    $region77: #{tpu_custom_call.1} parent=1 // pred_fallthru
      _
    %905 = vsyncpa [#allocation3], 1
    %906 = vsyncpa [#allocation6], 1
    %907 = vsyncpa [#allocation9], 1
    %908 = vsyncpa [#allocation12], 1
    %909 = vsyncpa [#allocation4], 1

</llo_original>
